<compile_context>
chip_gen: v5e
topology: v5e:2x2
jax: 0.10.0
libtpu: 0.0.40
codegen_flags: <defaults>
</compile_context>

<pallas_src>
import functools

import jax
import jax.numpy as jnp
from jax.experimental import pallas as pl
from jax.experimental.pallas import tpu as pltpu

HIDDEN_DIM = 256  # fixed in STID_Prompt.__init__ (self.hidden_dim = 256)


# ----------------------------------------------------------------------------
# Pallas kernel: encoder MLP stack + regression 1x1 conv
# ----------------------------------------------------------------------------
def _stid_mlp_kernel(num_layer, compute_dtype,
                     x_ref, w1_ref, b1_ref, w2_ref, b2_ref, wr_ref, br_ref,
                     o_ref):
    # Residual stream kept in f32; matmul operands fed to the MXU in bf16.
    h0 = x_ref[...].astype(jnp.float32)

    def layer(l, h):
        # MultiLayerPerceptron: fc2(relu(fc1(h))) + h   (dropout == identity)
        z = jnp.dot(h.astype(compute_dtype), w1_ref[l],
                    preferred_element_type=jnp.float32) + b1_ref[l]
        z = jnp.maximum(z, 0.0)
        z = jnp.dot(z.astype(compute_dtype), w2_ref[l],
                    preferred_element_type=jnp.float32) + b2_ref[l]
        return h + z

    if num_layer <= 8:
        # Small & static -> unrolled (static weight indexing, no dyn-slice).
        h = h0
        for l in range(num_layer):
            h = layer(l, h)
    else:
        # Long chains: bound code size / live ranges with a real loop.
        h = jax.lax.fori_loop(0, num_layer, layer, h0)

    out = jnp.dot(h.astype(compute_dtype), wr_ref[...],
                  preferred_element_type=jnp.float32) + br_ref[...]
    o_ref[...] = out.astype(o_ref.dtype)


def _round_up(x, m):
    return ((x + m - 1) // m) * m


def _choose_tm(M):
    """Pick an MXU-friendly M tile (multiples of 16 for bf16 sublane packing).

    * M <= 256   : one tile covering everything.
    * 256<M<=2048: two (near-)equal 256-aligned tiles -> grid of 2, so both
                   v7x TensorCores get work via the 'parallel' grid axis.
    * large M    : 1024-row tiles (a 1024x256 f32 tile is only ~1 MiB, so
                   double-buffered in+out easily fits v7x's 64 MiB VMEM while
                   amortizing the ~0.35us per-grid-step overhead).
    Sweep 512/1024/2048 per generation if this becomes the dominant kernel.
    """
    if M <= 256:
        return _round_up(max(M, 16), 16)
    if M <= 2048:
        return _round_up(pl.cdiv(M, 2), 256)
    return 1024


def stid_encoder_regression(x, params, *, tm=None, compute_dtype=jnp.bfloat16):
    """x: [B, S, C]; returns encoder(x) passed through regression_layer.

    Output dtype follows x.dtype (f32 in -> f32 out, lossless since the kernel
    accumulates in f32).  On v6e, feeding x already in bf16 also halves the
    activation HBM traffic and keeps the kernel compute-bound.
    """
    B, S, C = x.shape
    assert C == HIDDEN_DIM and C % 128 == 0
    M = B * S
    num_layer = params["w1"].shape[0]

    if tm is None:
        tm = _choose_tm(M)
    grid_m = pl.cdiv(M, tm)   # ragged last block handled by Pallas (row-wise op)

    x2 = x.reshape(M, C)
    if x2.dtype != compute_dtype:
        x2 = x2.astype(compute_dtype)

    # bf16 matmul operands; biases stay f32 (added post-MXU in f32).
    w1 = params["w1"].astype(compute_dtype)
    w2 = params["w2"].astype(compute_dtype)
    wr = params["wr"].astype(compute_dtype)
    b1 = params["b1"].astype(jnp.float32)
    b2 = params["b2"].astype(jnp.float32)
    br = params["br"].astype(jnp.float32)

    out_dtype = x.dtype
    kernel = functools.partial(_stid_mlp_kernel, num_layer, compute_dtype)

    # Explicit scoped-VMEM budget:
    #   resident weights (double-buffered), biases (sublane-padded to 8 rows),
    #   in/out tiles (double-buffered), plus the in-kernel f32 h/z temporaries.
    w_sz = jnp.dtype(compute_dtype).itemsize
    x_sz = jnp.dtype(x2.dtype).itemsize
    o_sz = jnp.dtype(out_dtype).itemsize
    weight_bytes = 2 * (2 * num_layer + 1) * C * C * w_sz
    bias_bytes = 2 * (2 * num_layer + 1) * 8 * C * 4
    io_tile_bytes = 2 * tm * C * x_sz + 2 * tm * C * o_sz
    interm_bytes = 6 * tm * C * 4          # f32 h/z + bf16 operand casts
    vmem_need = weight_bytes + bias_bytes + io_tile_bytes + interm_bytes
    vmem_limit = int(min(max(vmem_need * 1.4 + (2 << 20), 16 << 20), 48 << 20))

    out = pl.pallas_call(
        kernel,
        out_shape=jax.ShapeDtypeStruct((M, C), out_dtype),
        grid_spec=pltpu.PrefetchScalarGridSpec(
            num_scalar_prefetch=0,
            grid=(grid_m,),
            in_specs=[
                pl.BlockSpec((tm, C), lambda i: (i, 0)),                # x tile
                pl.BlockSpec((num_layer, C, C), lambda i: (0, 0, 0)),   # fc1 W (resident)
                pl.BlockSpec((num_layer, 1, C), lambda i: (0, 0, 0)),   # fc1 b
                pl.BlockSpec((num_layer, C, C), lambda i: (0, 0, 0)),   # fc2 W (resident)
                pl.BlockSpec((num_layer, 1, C), lambda i: (0, 0, 0)),   # fc2 b
                pl.BlockSpec((C, C), lambda i: (0, 0)),                 # regression W
                pl.BlockSpec((1, C), lambda i: (0, 0)),                 # regression b
            ],
            out_specs=pl.BlockSpec((tm, C), lambda i: (i, 0)),
        ),
        compiler_params=pltpu.CompilerParams(
            dimension_semantics=("parallel",),
            vmem_limit_bytes=vmem_limit),
    )(x2, w1, b1, w2, b2, wr, br)

    return out.reshape(B, S, C)


# ----------------------------------------------------------------------------
# Plain-JAX glue mirroring the PyTorch forward's data prep
# ----------------------------------------------------------------------------
def stid_prompt_forward(history_data, future_data, x_attn, params,
                        data_name="PEMS_synth"):
    # combined_data = cat((history, future), dim=1)           [B, L_tot, N, C]
    combined = jnp.concatenate([history_data, future_data], axis=1)
    # imgs = combined[..., [0]].permute(0, 3, 1, 2).unsqueeze(-1)
    imgs = jnp.transpose(combined[..., 0:1], (0, 3, 1, 2))[..., None]  # [B,1,L_tot,N,1]
    # imgs_mark = combined[:, :, 0, [1, 2]]
    imgs_mark = combined[:, :, 0, 1:3]                                 # [B, L_tot, 2]
    if "PEMS" not in data_name:
        # PyTorch would fail on `time_of_day * None`; make the failure explicit.
        raise ValueError("STID_Prompt forward requires a PEMS-style data_name "
                         "(steps_per_day is only defined for 'PEMS').")
    steps_per_day = 288
    time_of_day = imgs_mark[..., 0]
    day_of_week = imgs_mark[..., 1]
    # .long() in PyTorch is int64; int32 used here (x64 disabled by default)
    original_hours = jnp.floor(time_of_day * steps_per_day).astype(jnp.int32)
    original_days = jnp.floor(day_of_week * 7).astype(jnp.int32)
    imgs_mark = jnp.stack([original_days, original_hours], axis=-1)    # [B, L_tot, 2]

    # TODO(synk): prompt.adpative_graph / forward_encoder are external; x_attn
    #             (the encoder-stack input of shape [B, S, 256]) is supplied.
    hidden = stid_encoder_regression(x_attn, params)  # Pallas hot path
    # TODO(synk): prompt.forward_decoder / Output_Proj and the final
    #             prediction[:, input_len:, ...] slice depend on the external
    #             prompt module and are not reproduced.
    return hidden, imgs, imgs_mark


# ----------------------------------------------------------------------------
# Deterministic parameter init (synthetic; shapes from __init__)
# ----------------------------------------------------------------------------
def init_params(key, num_layer, C=HIDDEN_DIM, weight_dtype=jnp.bfloat16):
    ks = jax.random.split(key, 6)
    scale = 1.0 / jnp.sqrt(C)
    u = lambda k, shape: jax.random.uniform(k, shape, jnp.float32, -scale, scale)
    # Weights stored as [in, out] so the kernel computes x @ W (== conv W.T),
    # already in the MXU compute dtype; biases stay f32.
    return {
        "w1": u(ks[0], (num_layer, C, C)).astype(weight_dtype),
        "b1": u(ks[1], (num_layer, 1, C)),
        "w2": u(ks[2], (num_layer, C, C)).astype(weight_dtype),
        "b2": u(ks[3], (num_layer, 1, C)),
        "wr": u(ks[4], (C, C)).astype(weight_dtype),
        "br": u(ks[5], (1, C)),
    }


def _reference(x, params):
    """Pure-JAX reference using the same bf16 operands + f32 accumulation."""
    cd = params["w1"].dtype
    h = x.astype(cd).astype(jnp.float32)
    for l in range(params["w1"].shape[0]):
        z = jnp.dot(h.astype(cd), params["w1"][l],
                    preferred_element_type=jnp.float32) + params["b1"][l]
        z = jnp.maximum(z, 0.0)
        z = jnp.dot(z.astype(cd), params["w2"][l],
                    preferred_element_type=jnp.float32) + params["b2"][l]
        h = h + z
    return jnp.dot(h.astype(cd), params["wr"],
                   preferred_element_type=jnp.float32) + params["br"]


if __name__ == "__main__":
    key = jax.random.PRNGKey(0)
    k_h, k_f, k_x, k_p, k_m, k_b = jax.random.split(key, 6)

    # Small shapes consistent with the forward: history [B, L, N, C_in=3]
    B, L_in, L_out, N, C_in = 2, 8, 8, 16, 3
    num_layer = 3
    S = 16  # number of tokens produced by the (external) prompt encoder

    history_data = jax.random.uniform(k_h, (B, L_in, N, C_in), jnp.float32)
    future_data = jax.random.uniform(k_f, (B, L_out, N, C_in), jnp.float32)
    x_attn = jax.random.normal(k_x, (B, S, HIDDEN_DIM), jnp.float32)
    params = init_params(k_p, num_layer)

    hidden, imgs, imgs_mark = stid_prompt_forward(
        history_data, future_data, x_attn, params, data_name="PEMS_synth")
    hidden = jax.block_until_ready(hidden)

    # correctness check vs. bf16-operand reference (single-tile path, M=32)
    ref = _reference(x_attn.reshape(-1, HIDDEN_DIM), params).reshape(B, S, HIDDEN_DIM)
    assert hidden.shape == (B, S, HIDDEN_DIM)
    assert imgs.shape == (B, 1, L_in + L_out, N, 1)
    assert imgs_mark.shape == (B, L_in + L_out, 2)
    assert jnp.allclose(hidden, ref, atol=1e-2, rtol=1e-2)

    # ragged-M, grid==2 path: M = 1200 -> tm = 768, last block partially valid
    x_mid = jax.random.normal(k_m, (4, 300, HIDDEN_DIM), jnp.float32)
    out_mid = jax.block_until_ready(stid_encoder_regression(x_mid, params))
    ref_mid = _reference(x_mid.reshape(-1, HIDDEN_DIM), params).reshape(4, 300, HIDDEN_DIM)
    assert out_mid.shape == (4, 300, HIDDEN_DIM)
    assert jnp.allclose(out_mid, ref_mid, atol=1e-2, rtol=1e-2)

    # large-M path: M = 2304 -> tm = 1024, grid = 3, ragged last block
    x_big = jax.random.normal(k_b, (3, 768, HIDDEN_DIM), jnp.float32)
    out_big = jax.block_until_ready(stid_encoder_regression(x_big, params))
    ref_big = _reference(x_big.reshape(-1, HIDDEN_DIM), params).reshape(3, 768, HIDDEN_DIM)
    assert out_big.shape == (3, 768, HIDDEN_DIM)
    assert jnp.allclose(out_big, ref_big, atol=1e-2, rtol=1e-2)

    print("KERNEL_OK")
</pallas_src>

<mosaic_0001>
module attributes {stable_mosaic.version = 11 : i64} {
  func.func @_stid_mlp_kernel(%arg0: i32, %arg1: memref<32x256xbf16, #tpu.memory_space<vmem>>, %arg2: memref<3x256x256xbf16, #tpu.memory_space<vmem>>, %arg3: memref<3x1x256xf32, #tpu.memory_space<vmem>>, %arg4: memref<3x256x256xbf16, #tpu.memory_space<vmem>>, %arg5: memref<3x1x256xf32, #tpu.memory_space<vmem>>, %arg6: memref<256x256xbf16, #tpu.memory_space<vmem>>, %arg7: memref<1x256xf32, #tpu.memory_space<vmem>>, %arg8: memref<32x256xf32, #tpu.memory_space<vmem>>) attributes {dimension_semantics = [#tpu.dimension_semantics<parallel>], iteration_bounds = array<i64: 1>, scalar_prefetch = 0 : i64, scratch_operands = 0 : i64, tpu.core_type = #tpu.core_type<tc>, window_params = [{transform_indices = @transform_0, window_bounds = array<i64: 32, 256>}, {pipeline_mode = #tpu.pipeline_mode<synchronous>, transform_indices = @transform_1, window_bounds = array<i64: 3, 256, 256>}, {pipeline_mode = #tpu.pipeline_mode<synchronous>, transform_indices = @transform_2, window_bounds = array<i64: 3, 1, 256>}, {pipeline_mode = #tpu.pipeline_mode<synchronous>, transform_indices = @transform_3, window_bounds = array<i64: 3, 256, 256>}, {pipeline_mode = #tpu.pipeline_mode<synchronous>, transform_indices = @transform_4, window_bounds = array<i64: 3, 1, 256>}, {pipeline_mode = #tpu.pipeline_mode<synchronous>, transform_indices = @transform_5, window_bounds = array<i64: 256, 256>}, {pipeline_mode = #tpu.pipeline_mode<synchronous>, transform_indices = @transform_6, window_bounds = array<i64: 1, 256>}, {transform_indices = @transform_7, window_bounds = array<i64: 32, 256>}]} {
    %c0 = arith.constant 0 : index
    %c0_0 = arith.constant 0 : index
    %0 = vector.load %arg1[%c0, %c0_0] : memref<32x256xbf16, #tpu.memory_space<vmem>>, vector<32x256xbf16>
    %1 = arith.extf %0 : vector<32x256xbf16> to vector<32x256xf32>
    %2 = arith.truncf %1 : vector<32x256xf32> to vector<32x256xbf16>
    %c0_1 = arith.constant 0 : index
    %c0_2 = arith.constant 0 : index
    %c0_3 = arith.constant 0 : index
    %3 = vector.load %arg2[%c0_1, %c0_2, %c0_3] : memref<3x256x256xbf16, #tpu.memory_space<vmem>>, vector<1x256x256xbf16>
    %4 = vector.shape_cast %3 : vector<1x256x256xbf16> to vector<256x256xbf16>
    %cst = arith.constant dense<0.000000e+00> : vector<32x256xf32>
    %5 = tpu.matmul %2, %4, %cst {dimension_numbers = #tpu.dot_dimension_numbers<[1], [0], [0], [1], [0, 0, 1, 1], [], []>} : vector<32x256xbf16>, vector<256x256xbf16>, vector<32x256xf32> -> vector<32x256xf32>
    %c0_4 = arith.constant 0 : index
    %c0_5 = arith.constant 0 : index
    %c0_6 = arith.constant 0 : index
    %6 = vector.load %arg3[%c0_4, %c0_5, %c0_6] : memref<3x1x256xf32, #tpu.memory_space<vmem>>, vector<1x1x256xf32>
    %7 = vector.shape_cast %6 : vector<1x1x256xf32> to vector<1x256xf32>
    %8 = vector.broadcast %7 : vector<1x256xf32> to vector<32x256xf32>
    %9 = arith.addf %5, %8 : vector<32x256xf32>
    %cst_7 = arith.constant 0.000000e+00 : f32
    %10 = vector.broadcast %cst_7 : f32 to vector<32x256xf32>
    %11 = arith.maximumf %9, %10 : vector<32x256xf32>
    %12 = arith.truncf %11 : vector<32x256xf32> to vector<32x256xbf16>
    %c0_8 = arith.constant 0 : index
    %c0_9 = arith.constant 0 : index
    %c0_10 = arith.constant 0 : index
    %13 = vector.load %arg4[%c0_8, %c0_9, %c0_10] : memref<3x256x256xbf16, #tpu.memory_space<vmem>>, vector<1x256x256xbf16>
    %14 = vector.shape_cast %13 : vector<1x256x256xbf16> to vector<256x256xbf16>
    %cst_11 = arith.constant dense<0.000000e+00> : vector<32x256xf32>
    %15 = tpu.matmul %12, %14, %cst_11 {dimension_numbers = #tpu.dot_dimension_numbers<[1], [0], [0], [1], [0, 0, 1, 1], [], []>} : vector<32x256xbf16>, vector<256x256xbf16>, vector<32x256xf32> -> vector<32x256xf32>
    %c0_12 = arith.constant 0 : index
    %c0_13 = arith.constant 0 : index
    %c0_14 = arith.constant 0 : index
    %16 = vector.load %arg5[%c0_12, %c0_13, %c0_14] : memref<3x1x256xf32, #tpu.memory_space<vmem>>, vector<1x1x256xf32>
    %17 = vector.shape_cast %16 : vector<1x1x256xf32> to vector<1x256xf32>
    %18 = vector.broadcast %17 : vector<1x256xf32> to vector<32x256xf32>
    %19 = arith.addf %15, %18 : vector<32x256xf32>
    %20 = arith.addf %1, %19 : vector<32x256xf32>
    %21 = arith.truncf %20 : vector<32x256xf32> to vector<32x256xbf16>
    %c1 = arith.constant 1 : index
    %c0_15 = arith.constant 0 : index
    %c0_16 = arith.constant 0 : index
    %22 = vector.load %arg2[%c1, %c0_15, %c0_16] : memref<3x256x256xbf16, #tpu.memory_space<vmem>>, vector<1x256x256xbf16>
    %23 = vector.shape_cast %22 : vector<1x256x256xbf16> to vector<256x256xbf16>
    %cst_17 = arith.constant dense<0.000000e+00> : vector<32x256xf32>
    %24 = tpu.matmul %21, %23, %cst_17 {dimension_numbers = #tpu.dot_dimension_numbers<[1], [0], [0], [1], [0, 0, 1, 1], [], []>} : vector<32x256xbf16>, vector<256x256xbf16>, vector<32x256xf32> -> vector<32x256xf32>
    %c1_18 = arith.constant 1 : index
    %c0_19 = arith.constant 0 : index
    %c0_20 = arith.constant 0 : index
    %25 = vector.load %arg3[%c1_18, %c0_19, %c0_20] : memref<3x1x256xf32, #tpu.memory_space<vmem>>, vector<1x1x256xf32>
    %26 = vector.shape_cast %25 : vector<1x1x256xf32> to vector<1x256xf32>
    %27 = vector.broadcast %26 : vector<1x256xf32> to vector<32x256xf32>
    %28 = arith.addf %24, %27 : vector<32x256xf32>
    %cst_21 = arith.constant 0.000000e+00 : f32
    %29 = vector.broadcast %cst_21 : f32 to vector<32x256xf32>
    %30 = arith.maximumf %28, %29 : vector<32x256xf32>
    %31 = arith.truncf %30 : vector<32x256xf32> to vector<32x256xbf16>
    %c1_22 = arith.constant 1 : index
    %c0_23 = arith.constant 0 : index
    %c0_24 = arith.constant 0 : index
    %32 = vector.load %arg4[%c1_22, %c0_23, %c0_24] : memref<3x256x256xbf16, #tpu.memory_space<vmem>>, vector<1x256x256xbf16>
    %33 = vector.shape_cast %32 : vector<1x256x256xbf16> to vector<256x256xbf16>
    %cst_25 = arith.constant dense<0.000000e+00> : vector<32x256xf32>
    %34 = tpu.matmul %31, %33, %cst_25 {dimension_numbers = #tpu.dot_dimension_numbers<[1], [0], [0], [1], [0, 0, 1, 1], [], []>} : vector<32x256xbf16>, vector<256x256xbf16>, vector<32x256xf32> -> vector<32x256xf32>
    %c1_26 = arith.constant 1 : index
    %c0_27 = arith.constant 0 : index
    %c0_28 = arith.constant 0 : index
    %35 = vector.load %arg5[%c1_26, %c0_27, %c0_28] : memref<3x1x256xf32, #tpu.memory_space<vmem>>, vector<1x1x256xf32>
    %36 = vector.shape_cast %35 : vector<1x1x256xf32> to vector<1x256xf32>
    %37 = vector.broadcast %36 : vector<1x256xf32> to vector<32x256xf32>
    %38 = arith.addf %34, %37 : vector<32x256xf32>
    %39 = arith.addf %20, %38 : vector<32x256xf32>
    %40 = arith.truncf %39 : vector<32x256xf32> to vector<32x256xbf16>
    %c2 = arith.constant 2 : index
    %c0_29 = arith.constant 0 : index
    %c0_30 = arith.constant 0 : index
    %41 = vector.load %arg2[%c2, %c0_29, %c0_30] : memref<3x256x256xbf16, #tpu.memory_space<vmem>>, vector<1x256x256xbf16>
    %42 = vector.shape_cast %41 : vector<1x256x256xbf16> to vector<256x256xbf16>
    %cst_31 = arith.constant dense<0.000000e+00> : vector<32x256xf32>
    %43 = tpu.matmul %40, %42, %cst_31 {dimension_numbers = #tpu.dot_dimension_numbers<[1], [0], [0], [1], [0, 0, 1, 1], [], []>} : vector<32x256xbf16>, vector<256x256xbf16>, vector<32x256xf32> -> vector<32x256xf32>
    %c2_32 = arith.constant 2 : index
    %c0_33 = arith.constant 0 : index
    %c0_34 = arith.constant 0 : index
    %44 = vector.load %arg3[%c2_32, %c0_33, %c0_34] : memref<3x1x256xf32, #tpu.memory_space<vmem>>, vector<1x1x256xf32>
    %45 = vector.shape_cast %44 : vector<1x1x256xf32> to vector<1x256xf32>
    %46 = vector.broadcast %45 : vector<1x256xf32> to vector<32x256xf32>
    %47 = arith.addf %43, %46 : vector<32x256xf32>
    %cst_35 = arith.constant 0.000000e+00 : f32
    %48 = vector.broadcast %cst_35 : f32 to vector<32x256xf32>
    %49 = arith.maximumf %47, %48 : vector<32x256xf32>
    %50 = arith.truncf %49 : vector<32x256xf32> to vector<32x256xbf16>
    %c2_36 = arith.constant 2 : index
    %c0_37 = arith.constant 0 : index
    %c0_38 = arith.constant 0 : index
    %51 = vector.load %arg4[%c2_36, %c0_37, %c0_38] : memref<3x256x256xbf16, #tpu.memory_space<vmem>>, vector<1x256x256xbf16>
    %52 = vector.shape_cast %51 : vector<1x256x256xbf16> to vector<256x256xbf16>
    %cst_39 = arith.constant dense<0.000000e+00> : vector<32x256xf32>
    %53 = tpu.matmul %50, %52, %cst_39 {dimension_numbers = #tpu.dot_dimension_numbers<[1], [0], [0], [1], [0, 0, 1, 1], [], []>} : vector<32x256xbf16>, vector<256x256xbf16>, vector<32x256xf32> -> vector<32x256xf32>
    %c2_40 = arith.constant 2 : index
    %c0_41 = arith.constant 0 : index
    %c0_42 = arith.constant 0 : index
    %54 = vector.load %arg5[%c2_40, %c0_41, %c0_42] : memref<3x1x256xf32, #tpu.memory_space<vmem>>, vector<1x1x256xf32>
    %55 = vector.shape_cast %54 : vector<1x1x256xf32> to vector<1x256xf32>
    %56 = vector.broadcast %55 : vector<1x256xf32> to vector<32x256xf32>
    %57 = arith.addf %53, %56 : vector<32x256xf32>
    %58 = arith.addf %39, %57 : vector<32x256xf32>
    %59 = arith.truncf %58 : vector<32x256xf32> to vector<32x256xbf16>
    %c0_43 = arith.constant 0 : index
    %c0_44 = arith.constant 0 : index
    %60 = vector.load %arg6[%c0_43, %c0_44] : memref<256x256xbf16, #tpu.memory_space<vmem>>, vector<256x256xbf16>
    %cst_45 = arith.constant dense<0.000000e+00> : vector<32x256xf32>
    %61 = tpu.matmul %59, %60, %cst_45 {dimension_numbers = #tpu.dot_dimension_numbers<[1], [0], [0], [1], [0, 0, 1, 1], [], []>} : vector<32x256xbf16>, vector<256x256xbf16>, vector<32x256xf32> -> vector<32x256xf32>
    %c0_46 = arith.constant 0 : index
    %c0_47 = arith.constant 0 : index
    %62 = vector.load %arg7[%c0_46, %c0_47] : memref<1x256xf32, #tpu.memory_space<vmem>>, vector<1x256xf32>
    %63 = vector.broadcast %62 : vector<1x256xf32> to vector<32x256xf32>
    %64 = arith.addf %61, %63 : vector<32x256xf32>
    %c0_48 = arith.constant 0 : index
    %c0_49 = arith.constant 0 : index
    %65 = vector.load %arg8[%c0_48, %c0_49] : memref<32x256xf32, #tpu.memory_space<vmem>>, vector<32x256xf32>
    tpu.vector_store %arg8[%c0_48, %c0_49], %64 {strides = array<i32>} : memref<32x256xf32, #tpu.memory_space<vmem>>, vector<32x256xf32>,
    return
  }
  func.func @transform_0(%arg0: i32) -> (i32, i32) {
    %c0_i32 = arith.constant 0 : i32
    %c0_i32_0 = arith.constant 0 : i32
    return %arg0, %c0_i32 : i32, i32
  }
  func.func @transform_1(%arg0: i32) -> (i32, i32, i32) {
    %c0_i32 = arith.constant 0 : i32
    %c0_i32_0 = arith.constant 0 : i32
    %c0_i32_1 = arith.constant 0 : i32
    %c0_i32_2 = arith.constant 0 : i32
    return %c0_i32, %c0_i32_0, %c0_i32_1 : i32, i32, i32
  }
  func.func @transform_2(%arg0: i32) -> (i32, i32, i32) {
    %c0_i32 = arith.constant 0 : i32
    %c0_i32_0 = arith.constant 0 : i32
    %c0_i32_1 = arith.constant 0 : i32
    %c0_i32_2 = arith.constant 0 : i32
    return %c0_i32, %c0_i32_0, %c0_i32_1 : i32, i32, i32
  }
  func.func @transform_3(%arg0: i32) -> (i32, i32, i32) {
    %c0_i32 = arith.constant 0 : i32
    %c0_i32_0 = arith.constant 0 : i32
    %c0_i32_1 = arith.constant 0 : i32
    %c0_i32_2 = arith.constant 0 : i32
    return %c0_i32, %c0_i32_0, %c0_i32_1 : i32, i32, i32
  }
  func.func @transform_4(%arg0: i32) -> (i32, i32, i32) {
    %c0_i32 = arith.constant 0 : i32
    %c0_i32_0 = arith.constant 0 : i32
    %c0_i32_1 = arith.constant 0 : i32
    %c0_i32_2 = arith.constant 0 : i32
    return %c0_i32, %c0_i32_0, %c0_i32_1 : i32, i32, i32
  }
  func.func @transform_5(%arg0: i32) -> (i32, i32) {
    %c0_i32 = arith.constant 0 : i32
    %c0_i32_0 = arith.constant 0 : i32
    %c0_i32_1 = arith.constant 0 : i32
    return %c0_i32, %c0_i32_0 : i32, i32
  }
  func.func @transform_6(%arg0: i32) -> (i32, i32) {
    %c0_i32 = arith.constant 0 : i32
    %c0_i32_0 = arith.constant 0 : i32
    %c0_i32_1 = arith.constant 0 : i32
    return %c0_i32, %c0_i32_0 : i32, i32
  }
  func.func @transform_7(%arg0: i32) -> (i32, i32) {
    %c0_i32 = arith.constant 0 : i32
    %c0_i32_0 = arith.constant 0 : i32
    return %arg0, %c0_i32 : i32, i32
  }
}

</mosaic_0001>

<llo_original>
// kernel: tpu_custom_call.1
$region0: #{tpu_custom_call.1}
  #allocation0 [shape = 'u32[]', space=smem, size = 0x4, offset = 0x4, fixed_abs, tag = 'smem constant byte address 0x4 - core index']
  #allocation1 [shape = 'u32[72,128]{1,0:T(1,128)}', space=vmem, size = 0x9000, scoped, tag = 'internal scratch']
  %s0 = inlined_call_operand.hbm [shape: bf16[32,256], index: 0, kind: input, shape index: {}]
  %s1 = inlined_call_operand.hbm [shape: bf16[3,256,256], index: 1, kind: input, shape index: {}]
  %s2 = inlined_call_operand.hbm [shape: f32[3,1,256], index: 2, kind: input, shape index: {}]
  %s3 = inlined_call_operand.hbm [shape: bf16[3,256,256], index: 3, kind: input, shape index: {}]
  %s4 = inlined_call_operand.hbm [shape: f32[3,1,256], index: 4, kind: input, shape index: {}]
  %s5 = inlined_call_operand.hbm [shape: bf16[256,256], index: 5, kind: input, shape index: {}]
  %s6 = inlined_call_operand.vmem [shape: f32[1,256], index: 6, kind: input, shape index: {}]
  %s7 = inlined_call_operand.hbm [shape: f32[32,256], index: 7, kind: output, shape index: {}]
  %s8 = sld [smem:[#allocation0]]
  $region62: #{tpu_custom_call.1} parent=0
    _
  %s10 = ssub.s32 1, %s8
  %s11 = scalar_select 0, %s10, %s8
  $region1: #{tpu_custom_call.1} parent=0
    #allocation2 [shape = 'u8[16384]{0}', space=vmem, size = 0x4000, scoped, tag = 'input window, operand 0, single buffered']
    #allocation3 [shape = 's32[1]{0}', space=sflag, size = 0x4, scoped, tag = 'scoped memory for tpu_custom_call.1']
    #allocation4 [shape = 's32[1]{0}', space=sflag, size = 0x4, scoped, tag = 'scoped memory for tpu_custom_call.1']
    #allocation5 [shape = 'u8[393216]{0}', space=vmem, size = 0x60000, scoped, tag = 'input window, operand 1, single buffered']
    #allocation6 [shape = 's32[1]{0}', space=sflag, size = 0x4, scoped, tag = 'scoped memory for tpu_custom_call.1']
    #allocation7 [shape = 'u8[3072]{0}', space=vmem, size = 0xc00, scoped, tag = 'input window, operand 2, single buffered']
    #allocation8 [shape = 'u8[393216]{0}', space=vmem, size = 0x60000, scoped, tag = 'input window, operand 3, single buffered']
    #allocation9 [shape = 's32[1]{0}', space=sflag, size = 0x4, scoped, tag = 'scoped memory for tpu_custom_call.1']
    #allocation10 [shape = 'u8[3072]{0}', space=vmem, size = 0xc00, scoped, tag = 'input window, operand 4, single buffered']
    #allocation11 [shape = 'u8[131072]{0}', space=vmem, size = 0x20000, scoped, tag = 'input window, operand 5, single buffered']
    #allocation12 [shape = 's32[1]{0}', space=sflag, size = 0x4, scoped, tag = 'scoped memory for tpu_custom_call.1']
    #allocation13 [shape = 'u8[32768]{0}', space=vmem, size = 0x8000, scoped, tag = 'output window, operand 0, single buffered']
    %12 = vsyncpa [#allocation3], 0
    %13 = vsyncpa [#allocation6], 0
    %14 = vsyncpa [#allocation9], 0
    %15 = vsyncpa [#allocation12], 0
    %16 = vsyncpa [#allocation4], 0
    // Predicated region
    $region2: #{tpu_custom_call.1} parent=1 // pred_check
      _
    $region3: #{tpu_custom_call.1} parent=1 // pred_check_branch
      %18 = sbr.rel (0) target = $region5
    $region4: #{tpu_custom_call.1} parent=1 // pred_region
      %20 = vsyncadd [#allocation3], 0
      %s21 = sshll.u32 %s0, 4
      %s22 = int_to_ptr.hbm [resolvable:$true] %s21
      %s23 = sshll.u32 [#allocation2], 4
      %s24 = int_to_ptr.vmem [resolvable:$true] %s23
      %29 = dma.hbm_to_vmem [thread:$0]  %s22, 512, %s24, [#allocation3], 128, 128, 8
    $region5: #{tpu_custom_call.1} parent=1 // pred_fallthru
      _
    // Predicated region
    $region6: #{tpu_custom_call.1} parent=1 // pred_check
      _
    $region7: #{tpu_custom_call.1} parent=1 // pred_check_branch
      %31 = sbr.rel (0) target = $region9
    $region8: #{tpu_custom_call.1} parent=1 // pred_region
      %33 = vsyncadd [#allocation6], 0
      %s34 = sshll.u32 %s1, 4
      %s35 = int_to_ptr.hbm [resolvable:$true] %s34
      %s36 = sshll.u32 [#allocation5], 4
      %s37 = int_to_ptr.vmem [resolvable:$true] %s36
      %42 = dma.hbm_to_vmem [thread:$0]  %s35, 12288, %s37, [#allocation6], 128, 128, 8
    $region9: #{tpu_custom_call.1} parent=1 // pred_fallthru
      _
    // Predicated region
    $region10: #{tpu_custom_call.1} parent=1 // pred_check
      _
    $region11: #{tpu_custom_call.1} parent=1 // pred_check_branch
      %44 = sbr.rel (0) target = $region13
    $region12: #{tpu_custom_call.1} parent=1 // pred_region
      %46 = vsyncadd [#allocation6], 0
      %s47 = sshll.u32 %s2, 4
      %s48 = int_to_ptr.hbm [resolvable:$true] %s47
      %s49 = sshll.u32 [#allocation7], 4
      %s50 = int_to_ptr.vmem [resolvable:$true] %s49
      %55 = dma.hbm_to_vmem [thread:$0]  %s48, 96, %s50, [#allocation6], 32, 32, 2
    $region13: #{tpu_custom_call.1} parent=1 // pred_fallthru
      _
    // Predicated region
    $region14: #{tpu_custom_call.1} parent=1 // pred_check
      _
    $region15: #{tpu_custom_call.1} parent=1 // pred_check_branch
      %57 = sbr.rel (0) target = $region17
    $region16: #{tpu_custom_call.1} parent=1 // pred_region
      %59 = vsyncadd [#allocation9], 0
      %s60 = sshll.u32 %s3, 4
      %s61 = int_to_ptr.hbm [resolvable:$true] %s60
      %s62 = sshll.u32 [#allocation8], 4
      %s63 = int_to_ptr.vmem [resolvable:$true] %s62
      %68 = dma.hbm_to_vmem [thread:$0]  %s61, 12288, %s63, [#allocation9], 128, 128, 8
    $region17: #{tpu_custom_call.1} parent=1 // pred_fallthru
      _
    // Predicated region
    $region18: #{tpu_custom_call.1} parent=1 // pred_check
      _
    $region19: #{tpu_custom_call.1} parent=1 // pred_check_branch
      %70 = sbr.rel (0) target = $region21
    $region20: #{tpu_custom_call.1} parent=1 // pred_region
      %72 = vsyncadd [#allocation9], 0
      %s73 = sshll.u32 %s4, 4
      %s74 = int_to_ptr.hbm [resolvable:$true] %s73
      %s75 = sshll.u32 [#allocation10], 4
      %s76 = int_to_ptr.vmem [resolvable:$true] %s75
      %81 = dma.hbm_to_vmem [thread:$0]  %s74, 96, %s76, [#allocation9], 32, 32, 2
    $region21: #{tpu_custom_call.1} parent=1 // pred_fallthru
      _
    // Predicated region
    $region22: #{tpu_custom_call.1} parent=1 // pred_check
      _
    $region23: #{tpu_custom_call.1} parent=1 // pred_check_branch
      %83 = sbr.rel (0) target = $region25
    $region24: #{tpu_custom_call.1} parent=1 // pred_region
      %85 = vsyncadd [#allocation12], 0
      %s86 = sshll.u32 %s5, 4
      %s87 = int_to_ptr.hbm [resolvable:$true] %s86
      %s88 = sshll.u32 [#allocation11], 4
      %s89 = int_to_ptr.vmem [resolvable:$true] %s88
      %94 = dma.hbm_to_vmem [thread:$0]  %s87, 4096, %s89, [#allocation12], 128, 128, 8
    $region25: #{tpu_custom_call.1} parent=1 // pred_fallthru
      _
    // Predicated region
    $region26: #{tpu_custom_call.1} parent=1 // pred_check
      _
    $region27: #{tpu_custom_call.1} parent=1 // pred_check_branch
      %96 = sbr.rel (0) target = $region29
    $region28: #{tpu_custom_call.1} parent=1 // pred_region
      _
    $region29: #{tpu_custom_call.1} parent=1 // pred_fallthru
      _
    // Predicated region
    $region30: #{tpu_custom_call.1} parent=1 // pred_check
      _
    $region31: #{tpu_custom_call.1} parent=1 // pred_check_branch
      %98 = sbr.rel (0) target = $region33
    $region32: #{tpu_custom_call.1} parent=1 // pred_region
      %100 = dma.done [#allocation3], 512
    $region33: #{tpu_custom_call.1} parent=1 // pred_fallthru
      _
    // Predicated region
    $region34: #{tpu_custom_call.1} parent=1 // pred_check
      _
    $region35: #{tpu_custom_call.1} parent=1 // pred_check_branch
      %102 = sbr.rel (0) target = $region37
    $region36: #{tpu_custom_call.1} parent=1 // pred_region
      %104 = dma.done [#allocation6], 12288
    $region37: #{tpu_custom_call.1} parent=1 // pred_fallthru
      _
    // Predicated region
    $region38: #{tpu_custom_call.1} parent=1 // pred_check
      _
    $region39: #{tpu_custom_call.1} parent=1 // pred_check_branch
      %106 = sbr.rel (0) target = $region41
    $region40: #{tpu_custom_call.1} parent=1 // pred_region
      %108 = dma.done [#allocation6], 96
    $region41: #{tpu_custom_call.1} parent=1 // pred_fallthru
      _
    // Predicated region
    $region42: #{tpu_custom_call.1} parent=1 // pred_check
      _
    $region43: #{tpu_custom_call.1} parent=1 // pred_check_branch
      %110 = sbr.rel (0) target = $region45
    $region44: #{tpu_custom_call.1} parent=1 // pred_region
      %112 = dma.done [#allocation9], 12288
    $region45: #{tpu_custom_call.1} parent=1 // pred_fallthru
      _
    // Predicated region
    $region46: #{tpu_custom_call.1} parent=1 // pred_check
      _
    $region47: #{tpu_custom_call.1} parent=1 // pred_check_branch
      %114 = sbr.rel (0) target = $region49
    $region48: #{tpu_custom_call.1} parent=1 // pred_region
      %116 = dma.done [#allocation9], 96
    $region49: #{tpu_custom_call.1} parent=1 // pred_fallthru
      _
    // Predicated region
    $region50: #{tpu_custom_call.1} parent=1 // pred_check
      _
    $region51: #{tpu_custom_call.1} parent=1 // pred_check_branch
      %118 = sbr.rel (0) target = $region53
    $region52: #{tpu_custom_call.1} parent=1 // pred_region
      %120 = dma.done [#allocation12], 4096
    $region53: #{tpu_custom_call.1} parent=1 // pred_fallthru
      _
    %v121 = vld [vmem:[#allocation2] sm:$0xff]
    %v122 = vld [vmem:[#allocation2 + $0x8] sm:$0xff]
    %v123 = vld [vmem:[#allocation2 + $0x10] sm:$0xff]
    %v124 = vld [vmem:[#allocation2 + $0x18] sm:$0xff]
    %v125 = vunpack.c.l.bf16 %v121
    %v126 = vunpack.c.h.bf16 %v121
    %v127 = vunpack.c.l.bf16 %v122
    %v128 = vunpack.c.h.bf16 %v122
    %v129 = vunpack.c.l.bf16 %v123
    %v130 = vunpack.c.h.bf16 %v123
    %v131 = vunpack.c.l.bf16 %v124
    %v132 = vunpack.c.h.bf16 %v124
    %v133 = vld [vmem:[#allocation5] sm:$0xff]
    %v134 = vld [vmem:[#allocation5 + $0x8] sm:$0xff]
    %v135 = vld [vmem:[#allocation5 + $0x10] sm:$0xff]
    %v136 = vld [vmem:[#allocation5 + $0x18] sm:$0xff]
    %v137 = vld [vmem:[#allocation5 + $0x20] sm:$0xff]
    %v138 = vld [vmem:[#allocation5 + $0x28] sm:$0xff]
    %v139 = vld [vmem:[#allocation5 + $0x30] sm:$0xff]
    %v140 = vld [vmem:[#allocation5 + $0x38] sm:$0xff]
    %v141 = vld [vmem:[#allocation5 + $0x40] sm:$0xff]
    %v142 = vld [vmem:[#allocation5 + $0x48] sm:$0xff]
    %v143 = vld [vmem:[#allocation5 + $0x50] sm:$0xff]
    %v144 = vld [vmem:[#allocation5 + $0x58] sm:$0xff]
    %v145 = vld [vmem:[#allocation5 + $0x60] sm:$0xff]
    %v146 = vld [vmem:[#allocation5 + $0x68] sm:$0xff]
    %v147 = vld [vmem:[#allocation5 + $0x70] sm:$0xff]
    %v148 = vld [vmem:[#allocation5 + $0x78] sm:$0xff]
    %v149 = vld [vmem:[#allocation5 + $0x80] sm:$0xff]
    %v150 = vld [vmem:[#allocation5 + $0x88] sm:$0xff]
    %v151 = vld [vmem:[#allocation5 + $0x90] sm:$0xff]
    %v152 = vld [vmem:[#allocation5 + $0x98] sm:$0xff]
    %v153 = vld [vmem:[#allocation5 + $0xa0] sm:$0xff]
    %v154 = vld [vmem:[#allocation5 + $0xa8] sm:$0xff]
    %v155 = vld [vmem:[#allocation5 + $0xb0] sm:$0xff]
    %v156 = vld [vmem:[#allocation5 + $0xb8] sm:$0xff]
    %v157 = vld [vmem:[#allocation5 + $0xc0] sm:$0xff]
    %v158 = vld [vmem:[#allocation5 + $0xc8] sm:$0xff]
    %v159 = vld [vmem:[#allocation5 + $0xd0] sm:$0xff]
    %v160 = vld [vmem:[#allocation5 + $0xd8] sm:$0xff]
    %v161 = vld [vmem:[#allocation5 + $0xe0] sm:$0xff]
    %v162 = vld [vmem:[#allocation5 + $0xe8] sm:$0xff]
    %v163 = vld [vmem:[#allocation5 + $0xf0] sm:$0xff]
    %v164 = vld [vmem:[#allocation5 + $0xf8] sm:$0xff]
    %v165 = vld [vmem:[#allocation7] sm:$0x3]
    %v167 = vperm.slane %v165, 0
    %v168 = vperm.slane %v165, 1
    %v175 = vunpack.c.l.b16 %v121
    %v176 = vunpack.c.h.b16 %v121
    %v177 = vunpack.c.l.b16 %v122
    %v178 = vunpack.c.h.b16 %v122
    %v179 = vunpack.c.l.b16 %v123
    %v180 = vunpack.c.h.b16 %v123
    %v181 = vunpack.c.l.b16 %v124
    %v182 = vunpack.c.h.b16 %v124
    %v183 = vpack.c.b16 %v177, %v175
    %v184 = vpack.c.b16 %v178, %v176
    %v185 = vpack.c.b16 %v181, %v179
    %v186 = vpack.c.b16 %v182, %v180
    %v223 = vunpack.c.l.b16 %v133
    %v224 = vunpack.c.h.b16 %v133
    %v225 = vunpack.c.l.b16 %v134
    %v226 = vunpack.c.h.b16 %v134
    %v227 = vunpack.c.l.b16 %v135
    %v228 = vunpack.c.h.b16 %v135
    %v229 = vunpack.c.l.b16 %v136
    %v230 = vunpack.c.h.b16 %v136
    %v231 = vunpack.c.l.b16 %v137
    %v232 = vunpack.c.h.b16 %v137
    %v233 = vunpack.c.l.b16 %v138
    %v234 = vunpack.c.h.b16 %v138
    %v235 = vunpack.c.l.b16 %v139
    %v236 = vunpack.c.h.b16 %v139
    %v237 = vunpack.c.l.b16 %v140
    %v238 = vunpack.c.h.b16 %v140
    %v239 = vunpack.c.l.b16 %v141
    %v240 = vunpack.c.h.b16 %v141
    %v241 = vunpack.c.l.b16 %v142
    %v242 = vunpack.c.h.b16 %v142
    %v243 = vunpack.c.l.b16 %v143
    %v244 = vunpack.c.h.b16 %v143
    %v245 = vunpack.c.l.b16 %v144
    %v246 = vunpack.c.h.b16 %v144
    %v247 = vunpack.c.l.b16 %v145
    %v248 = vunpack.c.h.b16 %v145
    %v249 = vunpack.c.l.b16 %v146
    %v250 = vunpack.c.h.b16 %v146
    %v251 = vunpack.c.l.b16 %v147
    %v252 = vunpack.c.h.b16 %v147
    %v253 = vunpack.c.l.b16 %v148
    %v254 = vunpack.c.h.b16 %v148
    %v255 = vunpack.c.l.b16 %v149
    %v256 = vunpack.c.h.b16 %v149
    %v257 = vunpack.c.l.b16 %v150
    %v258 = vunpack.c.h.b16 %v150
    %v259 = vunpack.c.l.b16 %v151
    %v260 = vunpack.c.h.b16 %v151
    %v261 = vunpack.c.l.b16 %v152
    %v262 = vunpack.c.h.b16 %v152
    %v263 = vunpack.c.l.b16 %v153
    %v264 = vunpack.c.h.b16 %v153
    %v265 = vunpack.c.l.b16 %v154
    %v266 = vunpack.c.h.b16 %v154
    %v267 = vunpack.c.l.b16 %v155
    %v268 = vunpack.c.h.b16 %v155
    %v269 = vunpack.c.l.b16 %v156
    %v270 = vunpack.c.h.b16 %v156
    %v271 = vunpack.c.l.b16 %v157
    %v272 = vunpack.c.h.b16 %v157
    %v273 = vunpack.c.l.b16 %v158
    %v274 = vunpack.c.h.b16 %v158
    %v275 = vunpack.c.l.b16 %v159
    %v276 = vunpack.c.h.b16 %v159
    %v277 = vunpack.c.l.b16 %v160
    %v278 = vunpack.c.h.b16 %v160
    %v279 = vunpack.c.l.b16 %v161
    %v280 = vunpack.c.h.b16 %v161
    %v281 = vunpack.c.l.b16 %v162
    %v282 = vunpack.c.h.b16 %v162
    %v283 = vunpack.c.l.b16 %v163
    %v284 = vunpack.c.h.b16 %v163
    %v285 = vunpack.c.l.b16 %v164
    %v286 = vunpack.c.h.b16 %v164
    %v287 = vpack.c.b16 %v225, %v223
    %v288 = vpack.c.b16 %v226, %v224
    %v289 = vpack.c.b16 %v229, %v227
    %v290 = vpack.c.b16 %v230, %v228
    %v291 = vpack.c.b16 %v233, %v231
    %v292 = vpack.c.b16 %v234, %v232
    %v293 = vpack.c.b16 %v237, %v235
    %v294 = vpack.c.b16 %v238, %v236
    %v295 = vpack.c.b16 %v241, %v239
    %v296 = vpack.c.b16 %v242, %v240
    %v297 = vpack.c.b16 %v245, %v243
    %v298 = vpack.c.b16 %v246, %v244
    %v299 = vpack.c.b16 %v249, %v247
    %v300 = vpack.c.b16 %v250, %v248
    %v301 = vpack.c.b16 %v253, %v251
    %v302 = vpack.c.b16 %v254, %v252
    %v303 = vpack.c.b16 %v257, %v255
    %v304 = vpack.c.b16 %v258, %v256
    %v305 = vpack.c.b16 %v261, %v259
    %v306 = vpack.c.b16 %v262, %v260
    %v307 = vpack.c.b16 %v265, %v263
    %v308 = vpack.c.b16 %v266, %v264
    %v309 = vpack.c.b16 %v269, %v267
    %v310 = vpack.c.b16 %v270, %v268
    %v311 = vpack.c.b16 %v273, %v271
    %v312 = vpack.c.b16 %v274, %v272
    %v313 = vpack.c.b16 %v277, %v275
    %v314 = vpack.c.b16 %v278, %v276
    %v315 = vpack.c.b16 %v281, %v279
    %v316 = vpack.c.b16 %v282, %v280
    %v317 = vpack.c.b16 %v285, %v283
    %v318 = vpack.c.b16 %v286, %v284
    %351 = vmatpush.bf16.msra.mxu0 %v301
    %352 = vmatpush.bf16.msra.mxu0 %v299
    %353 = vmatpush.bf16.msra.mxu0 %v297
    %354 = vmatpush.bf16.msra.mxu0 %v295
    %355 = vmatpush.bf16.msra.mxu0 %v293
    %356 = vmatpush.bf16.msra.mxu0 %v291
    %357 = vmatpush.bf16.msra.mxu0 %v289
    %358 = vmatpush.bf16.msra.mxu0 %v287
    %359 = vmatmul.bf16.gmra.mxu0 %v183
    %v360 = vpop.f32.mrf.mxu0
    %v361 = vadd.f32 %v167, %v360
    %v362 = vpop.f32.mrf.mxu0
    %v363 = vadd.f32 %v167, %v362
    %364 = vmatmul.bf16.gmra.mxu0 %v185
    %v365 = vpop.f32.mrf.mxu0
    %v366 = vadd.f32 %v167, %v365
    %v367 = vpop.f32.mrf.mxu0
    %v368 = vadd.f32 %v167, %v367
    %369 = vdwg.mxu0
    %370 = vmatpush.bf16.msra.mxu0 %v317
    %371 = vmatpush.bf16.msra.mxu0 %v315
    %372 = vmatpush.bf16.msra.mxu0 %v313
    %373 = vmatpush.bf16.msra.mxu0 %v311
    %374 = vmatpush.bf16.msra.mxu0 %v309
    %375 = vmatpush.bf16.msra.mxu0 %v307
    %376 = vmatpush.bf16.msra.mxu0 %v305
    %377 = vmatpush.bf16.msra.mxu0 %v303
    %378 = vmatmul.bf16.gmra.mxu0 %v184
    %v379 = vpop.f32.mrf.mxu0
    %v380 = vadd.f32 %v361, %v379
    %v381 = vpop.f32.mrf.mxu0
    %v382 = vadd.f32 %v363, %v381
    %383 = vmatmul.bf16.gmra.mxu0 %v186
    %v384 = vpop.f32.mrf.mxu0
    %v385 = vadd.f32 %v366, %v384
    %v386 = vpop.f32.mrf.mxu0
    %v387 = vadd.f32 %v368, %v386
    %388 = vdwg.mxu0
    %389 = vmatpush.bf16.msra.mxu0 %v302
    %390 = vmatpush.bf16.msra.mxu0 %v300
    %391 = vmatpush.bf16.msra.mxu0 %v298
    %392 = vmatpush.bf16.msra.mxu0 %v296
    %393 = vmatpush.bf16.msra.mxu0 %v294
    %394 = vmatpush.bf16.msra.mxu0 %v292
    %395 = vmatpush.bf16.msra.mxu0 %v290
    %396 = vmatpush.bf16.msra.mxu0 %v288
    %397 = vmatmul.bf16.gmra.mxu0 %v183
    %v398 = vpop.f32.mrf.mxu0
    %v399 = vadd.f32 %v168, %v398
    %v400 = vpop.f32.mrf.mxu0
    %v401 = vadd.f32 %v168, %v400
    %402 = vmatmul.bf16.gmra.mxu0 %v185
    %v403 = vpop.f32.mrf.mxu0
    %v404 = vadd.f32 %v168, %v403
    %v405 = vpop.f32.mrf.mxu0
    %v406 = vadd.f32 %v168, %v405
    %407 = vdwg.mxu0
    %408 = vmatpush.bf16.msra.mxu0 %v318
    %409 = vmatpush.bf16.msra.mxu0 %v316
    %410 = vmatpush.bf16.msra.mxu0 %v314
    %411 = vmatpush.bf16.msra.mxu0 %v312
    %412 = vmatpush.bf16.msra.mxu0 %v310
    %413 = vmatpush.bf16.msra.mxu0 %v308
    %414 = vmatpush.bf16.msra.mxu0 %v306
    %415 = vmatpush.bf16.msra.mxu0 %v304
    %416 = vmatmul.bf16.gmra.mxu0 %v184
    %v417 = vpop.f32.mrf.mxu0
    %v418 = vadd.f32 %v399, %v417
    %v419 = vpop.f32.mrf.mxu0
    %v420 = vadd.f32 %v401, %v419
    %421 = vmatmul.bf16.gmra.mxu0 %v186
    %v422 = vpop.f32.mrf.mxu0
    %v423 = vadd.f32 %v404, %v422
    %v424 = vpop.f32.mrf.mxu0
    %v425 = vadd.f32 %v406, %v424
    %426 = vdwg.mxu0
    %v427 = vmax.f32 %v380, 0.0
    %v428 = vmax.f32 %v418, 0.0
    %v429 = vmax.f32 %v382, 0.0
    %v430 = vmax.f32 %v420, 0.0
    %v431 = vmax.f32 %v385, 0.0
    %v432 = vmax.f32 %v423, 0.0
    %v433 = vmax.f32 %v387, 0.0
    %v434 = vmax.f32 %v425, 0.0
    %v435 = vpack.c.bf16 %v429, %v427
    %v436 = vpack.c.bf16 %v430, %v428
    %v437 = vpack.c.bf16 %v433, %v431
    %v438 = vpack.c.bf16 %v434, %v432
    %v439 = vld [vmem:[#allocation8] sm:$0xff]
    %v440 = vld [vmem:[#allocation8 + $0x8] sm:$0xff]
    %v441 = vld [vmem:[#allocation8 + $0x10] sm:$0xff]
    %v442 = vld [vmem:[#allocation8 + $0x18] sm:$0xff]
    %v443 = vld [vmem:[#allocation8 + $0x20] sm:$0xff]
    %v444 = vld [vmem:[#allocation8 + $0x28] sm:$0xff]
    %v445 = vld [vmem:[#allocation8 + $0x30] sm:$0xff]
    %v446 = vld [vmem:[#allocation8 + $0x38] sm:$0xff]
    %v447 = vld [vmem:[#allocation8 + $0x40] sm:$0xff]
    %v448 = vld [vmem:[#allocation8 + $0x48] sm:$0xff]
    %v449 = vld [vmem:[#allocation8 + $0x50] sm:$0xff]
    %v450 = vld [vmem:[#allocation8 + $0x58] sm:$0xff]
    %v451 = vld [vmem:[#allocation8 + $0x60] sm:$0xff]
    %v452 = vld [vmem:[#allocation8 + $0x68] sm:$0xff]
    %v453 = vld [vmem:[#allocation8 + $0x70] sm:$0xff]
    %v454 = vld [vmem:[#allocation8 + $0x78] sm:$0xff]
    %v455 = vld [vmem:[#allocation8 + $0x80] sm:$0xff]
    %v456 = vld [vmem:[#allocation8 + $0x88] sm:$0xff]
    %v457 = vld [vmem:[#allocation8 + $0x90] sm:$0xff]
    %v458 = vld [vmem:[#allocation8 + $0x98] sm:$0xff]
    %v459 = vld [vmem:[#allocation8 + $0xa0] sm:$0xff]
    %v460 = vld [vmem:[#allocation8 + $0xa8] sm:$0xff]
    %v461 = vld [vmem:[#allocation8 + $0xb0] sm:$0xff]
    %v462 = vld [vmem:[#allocation8 + $0xb8] sm:$0xff]
    %v463 = vld [vmem:[#allocation8 + $0xc0] sm:$0xff]
    %v464 = vld [vmem:[#allocation8 + $0xc8] sm:$0xff]
    %v465 = vld [vmem:[#allocation8 + $0xd0] sm:$0xff]
    %v466 = vld [vmem:[#allocation8 + $0xd8] sm:$0xff]
    %v467 = vld [vmem:[#allocation8 + $0xe0] sm:$0xff]
    %v468 = vld [vmem:[#allocation8 + $0xe8] sm:$0xff]
    %v469 = vld [vmem:[#allocation8 + $0xf0] sm:$0xff]
    %v470 = vld [vmem:[#allocation8 + $0xf8] sm:$0xff]
    %v471 = vld [vmem:[#allocation10] sm:$0x3]
    %v473 = vperm.slane %v471, 0
    %v474 = vperm.slane %v471, 1
    %v509 = vunpack.c.l.b16 %v439
    %v510 = vunpack.c.h.b16 %v439
    %v511 = vunpack.c.l.b16 %v440
    %v512 = vunpack.c.h.b16 %v440
    %v513 = vunpack.c.l.b16 %v441
    %v514 = vunpack.c.h.b16 %v441
    %v515 = vunpack.c.l.b16 %v442
    %v516 = vunpack.c.h.b16 %v442
    %v517 = vunpack.c.l.b16 %v443
    %v518 = vunpack.c.h.b16 %v443
    %v519 = vunpack.c.l.b16 %v444
    %v520 = vunpack.c.h.b16 %v444
    %v521 = vunpack.c.l.b16 %v445
    %v522 = vunpack.c.h.b16 %v445
    %v523 = vunpack.c.l.b16 %v446
    %v524 = vunpack.c.h.b16 %v446
    %v525 = vunpack.c.l.b16 %v447
    %v526 = vunpack.c.h.b16 %v447
    %v527 = vunpack.c.l.b16 %v448
    %v528 = vunpack.c.h.b16 %v448
    %v529 = vunpack.c.l.b16 %v449
    %v530 = vunpack.c.h.b16 %v449
    %v531 = vunpack.c.l.b16 %v450
    %v532 = vunpack.c.h.b16 %v450
    %v533 = vunpack.c.l.b16 %v451
    %v534 = vunpack.c.h.b16 %v451
    %v535 = vunpack.c.l.b16 %v452
    %v536 = vunpack.c.h.b16 %v452
    %v537 = vunpack.c.l.b16 %v453
    %v538 = vunpack.c.h.b16 %v453
    %v539 = vunpack.c.l.b16 %v454
    %v540 = vunpack.c.h.b16 %v454
    %v541 = vunpack.c.l.b16 %v455
    %v542 = vunpack.c.h.b16 %v455
    %v543 = vunpack.c.l.b16 %v456
    %v544 = vunpack.c.h.b16 %v456
    %v545 = vunpack.c.l.b16 %v457
    %v546 = vunpack.c.h.b16 %v457
    %v547 = vunpack.c.l.b16 %v458
    %v548 = vunpack.c.h.b16 %v458
    %v549 = vunpack.c.l.b16 %v459
    %v550 = vunpack.c.h.b16 %v459
    %v551 = vunpack.c.l.b16 %v460
    %v552 = vunpack.c.h.b16 %v460
    %v553 = vunpack.c.l.b16 %v461
    %v554 = vunpack.c.h.b16 %v461
    %v555 = vunpack.c.l.b16 %v462
    %v556 = vunpack.c.h.b16 %v462
    %v557 = vunpack.c.l.b16 %v463
    %v558 = vunpack.c.h.b16 %v463
    %v559 = vunpack.c.l.b16 %v464
    %v560 = vunpack.c.h.b16 %v464
    %v561 = vunpack.c.l.b16 %v465
    %v562 = vunpack.c.h.b16 %v465
    %v563 = vunpack.c.l.b16 %v466
    %v564 = vunpack.c.h.b16 %v466
    %v565 = vunpack.c.l.b16 %v467
    %v566 = vunpack.c.h.b16 %v467
    %v567 = vunpack.c.l.b16 %v468
    %v568 = vunpack.c.h.b16 %v468
    %v569 = vunpack.c.l.b16 %v469
    %v570 = vunpack.c.h.b16 %v469
    %v571 = vunpack.c.l.b16 %v470
    %v572 = vunpack.c.h.b16 %v470
    %v573 = vpack.c.b16 %v511, %v509
    %v574 = vpack.c.b16 %v512, %v510
    %v575 = vpack.c.b16 %v515, %v513
    %v576 = vpack.c.b16 %v516, %v514
    %v577 = vpack.c.b16 %v519, %v517
    %v578 = vpack.c.b16 %v520, %v518
    %v579 = vpack.c.b16 %v523, %v521
    %v580 = vpack.c.b16 %v524, %v522
    %v581 = vpack.c.b16 %v527, %v525
    %v582 = vpack.c.b16 %v528, %v526
    %v583 = vpack.c.b16 %v531, %v529
    %v584 = vpack.c.b16 %v532, %v530
    %v585 = vpack.c.b16 %v535, %v533
    %v586 = vpack.c.b16 %v536, %v534
    %v587 = vpack.c.b16 %v539, %v537
    %v588 = vpack.c.b16 %v540, %v538
    %v589 = vpack.c.b16 %v543, %v541
    %v590 = vpack.c.b16 %v544, %v542
    %v591 = vpack.c.b16 %v547, %v545
    %v592 = vpack.c.b16 %v548, %v546
    %v593 = vpack.c.b16 %v551, %v549
    %v594 = vpack.c.b16 %v552, %v550
    %v595 = vpack.c.b16 %v555, %v553
    %v596 = vpack.c.b16 %v556, %v554
    %v597 = vpack.c.b16 %v559, %v557
    %v598 = vpack.c.b16 %v560, %v558
    %v599 = vpack.c.b16 %v563, %v561
    %v600 = vpack.c.b16 %v564, %v562
    %v601 = vpack.c.b16 %v567, %v565
    %v602 = vpack.c.b16 %v568, %v566
    %v603 = vpack.c.b16 %v571, %v569
    %v604 = vpack.c.b16 %v572, %v570
    %637 = vmatpush.bf16.msra.mxu0 %v587
    %638 = vmatpush.bf16.msra.mxu0 %v585
    %639 = vmatpush.bf16.msra.mxu0 %v583
    %640 = vmatpush.bf16.msra.mxu0 %v581
    %641 = vmatpush.bf16.msra.mxu0 %v579
    %642 = vmatpush.bf16.msra.mxu0 %v577
    %643 = vmatpush.bf16.msra.mxu0 %v575
    %644 = vmatpush.bf16.msra.mxu0 %v573
    %645 = vmatmul.bf16.gmra.mxu0 %v435
    %v646 = vpop.f32.mrf.mxu0
    %v647 = vadd.f32 %v473, %v646
    %v648 = vpop.f32.mrf.mxu0
    %v649 = vadd.f32 %v473, %v648
    %650 = vmatmul.bf16.gmra.mxu0 %v437
    %v651 = vpop.f32.mrf.mxu0
    %v652 = vadd.f32 %v473, %v651
    %v653 = vpop.f32.mrf.mxu0
    %v654 = vadd.f32 %v473, %v653
    %655 = vdwg.mxu0
    %656 = vmatpush.bf16.msra.mxu0 %v603
    %657 = vmatpush.bf16.msra.mxu0 %v601
    %658 = vmatpush.bf16.msra.mxu0 %v599
    %659 = vmatpush.bf16.msra.mxu0 %v597
    %660 = vmatpush.bf16.msra.mxu0 %v595
    %661 = vmatpush.bf16.msra.mxu0 %v593
    %662 = vmatpush.bf16.msra.mxu0 %v591
    %663 = vmatpush.bf16.msra.mxu0 %v589
    %664 = vmatmul.bf16.gmra.mxu0 %v436
    %v665 = vpop.f32.mrf.mxu0
    %v666 = vadd.f32 %v647, %v665
    %v667 = vpop.f32.mrf.mxu0
    %v668 = vadd.f32 %v649, %v667
    %669 = vmatmul.bf16.gmra.mxu0 %v438
    %v670 = vpop.f32.mrf.mxu0
    %v671 = vadd.f32 %v652, %v670
    %v672 = vpop.f32.mrf.mxu0
    %v673 = vadd.f32 %v654, %v672
    %674 = vdwg.mxu0
    %675 = vmatpush.bf16.msra.mxu0 %v588
    %676 = vmatpush.bf16.msra.mxu0 %v586
    %677 = vmatpush.bf16.msra.mxu0 %v584
    %678 = vmatpush.bf16.msra.mxu0 %v582
    %679 = vmatpush.bf16.msra.mxu0 %v580
    %680 = vmatpush.bf16.msra.mxu0 %v578
    %681 = vmatpush.bf16.msra.mxu0 %v576
    %682 = vmatpush.bf16.msra.mxu0 %v574
    %683 = vmatmul.bf16.gmra.mxu0 %v435
    %v684 = vpop.f32.mrf.mxu0
    %v685 = vadd.f32 %v474, %v684
    %v686 = vpop.f32.mrf.mxu0
    %v687 = vadd.f32 %v474, %v686
    %688 = vmatmul.bf16.gmra.mxu0 %v437
    %v689 = vpop.f32.mrf.mxu0
    %v690 = vadd.f32 %v474, %v689
    %v691 = vpop.f32.mrf.mxu0
    %v692 = vadd.f32 %v474, %v691
    %693 = vdwg.mxu0
    %694 = vmatpush.bf16.msra.mxu0 %v604
    %695 = vmatpush.bf16.msra.mxu0 %v602
    %696 = vmatpush.bf16.msra.mxu0 %v600
    %697 = vmatpush.bf16.msra.mxu0 %v598
    %698 = vmatpush.bf16.msra.mxu0 %v596
    %699 = vmatpush.bf16.msra.mxu0 %v594
    %700 = vmatpush.bf16.msra.mxu0 %v592
    %701 = vmatpush.bf16.msra.mxu0 %v590
    %702 = vmatmul.bf16.gmra.mxu0 %v436
    %v703 = vpop.f32.mrf.mxu0
    %v704 = vadd.f32 %v685, %v703
    %v705 = vpop.f32.mrf.mxu0
    %v706 = vadd.f32 %v687, %v705
    %707 = vmatmul.bf16.gmra.mxu0 %v438
    %v708 = vpop.f32.mrf.mxu0
    %v709 = vadd.f32 %v690, %v708
    %v710 = vpop.f32.mrf.mxu0
    %v711 = vadd.f32 %v692, %v710
    %712 = vdwg.mxu0
    %v713 = vadd.f32 %v125, %v666
    %v714 = vadd.f32 %v126, %v704
    %v715 = vadd.f32 %v127, %v668
    %v716 = vadd.f32 %v128, %v706
    %v717 = vadd.f32 %v129, %v671
    %v718 = vadd.f32 %v130, %v709
    %v719 = vadd.f32 %v131, %v673
    %v720 = vadd.f32 %v132, %v711
    %v721 = vpack.c.bf16 %v715, %v713
    %v722 = vpack.c.bf16 %v716, %v714
    %v723 = vpack.c.bf16 %v719, %v717
    %v724 = vpack.c.bf16 %v720, %v718
    %s725 = scalar_lea.vmem [#allocation5], 256
    %v726 = vld [vmem:[%s725] sm:$0xff]
    %v727 = vld [vmem:[%s725 + $0x8] sm:$0xff]
    %v728 = vld [vmem:[%s725 + $0x10] sm:$0xff]
    %v729 = vld [vmem:[%s725 + $0x18] sm:$0xff]
    %v730 = vld [vmem:[%s725 + $0x20] sm:$0xff]
    %v731 = vld [vmem:[%s725 + $0x28] sm:$0xff]
    %v732 = vld [vmem:[%s725 + $0x30] sm:$0xff]
    %v733 = vld [vmem:[%s725 + $0x38] sm:$0xff]
    %v734 = vld [vmem:[%s725 + $0x40] sm:$0xff]
    %v735 = vld [vmem:[%s725 + $0x48] sm:$0xff]
    %v736 = vld [vmem:[%s725 + $0x50] sm:$0xff]
    %v737 = vld [vmem:[%s725 + $0x58] sm:$0xff]
    %v738 = vld [vmem:[%s725 + $0x60] sm:$0xff]
    %v739 = vld [vmem:[%s725 + $0x68] sm:$0xff]
    %v740 = vld [vmem:[%s725 + $0x70] sm:$0xff]
    %v741 = vld [vmem:[%s725 + $0x78] sm:$0xff]
    %v742 = vld [vmem:[%s725 + $0x80] sm:$0xff]
    %v743 = vld [vmem:[%s725 + $0x88] sm:$0xff]
    %v744 = vld [vmem:[%s725 + $0x90] sm:$0xff]
    %v745 = vld [vmem:[%s725 + $0x98] sm:$0xff]
    %v746 = vld [vmem:[%s725 + $0xa0] sm:$0xff]
    %v747 = vld [vmem:[%s725 + $0xa8] sm:$0xff]
    %v748 = vld [vmem:[%s725 + $0xb0] sm:$0xff]
    %v749 = vld [vmem:[%s725 + $0xb8] sm:$0xff]
    %v750 = vld [vmem:[%s725 + $0xc0] sm:$0xff]
    %v751 = vld [vmem:[%s725 + $0xc8] sm:$0xff]
    %v752 = vld [vmem:[%s725 + $0xd0] sm:$0xff]
    %v753 = vld [vmem:[%s725 + $0xd8] sm:$0xff]
    %v754 = vld [vmem:[%s725 + $0xe0] sm:$0xff]
    %v755 = vld [vmem:[%s725 + $0xe8] sm:$0xff]
    %v756 = vld [vmem:[%s725 + $0xf0] sm:$0xff]
    %v757 = vld [vmem:[%s725 + $0xf8] sm:$0xff]
    %s758 = scalar_lea.vmem [#allocation7], 2
    %v759 = vld [vmem:[%s758] sm:$0x3]
    %v761 = vperm.slane %v759, 0
    %v762 = vperm.slane %v759, 1
    %v797 = vunpack.c.l.b16 %v726
    %v798 = vunpack.c.h.b16 %v726
    %v799 = vunpack.c.l.b16 %v727
    %v800 = vunpack.c.h.b16 %v727
    %v801 = vunpack.c.l.b16 %v728
    %v802 = vunpack.c.h.b16 %v728
    %v803 = vunpack.c.l.b16 %v729
    %v804 = vunpack.c.h.b16 %v729
    %v805 = vunpack.c.l.b16 %v730
    %v806 = vunpack.c.h.b16 %v730
    %v807 = vunpack.c.l.b16 %v731
    %v808 = vunpack.c.h.b16 %v731
    %v809 = vunpack.c.l.b16 %v732
    %v810 = vunpack.c.h.b16 %v732
    %v811 = vunpack.c.l.b16 %v733
    %v812 = vunpack.c.h.b16 %v733
    %v813 = vunpack.c.l.b16 %v734
    %v814 = vunpack.c.h.b16 %v734
    %v815 = vunpack.c.l.b16 %v735
    %v816 = vunpack.c.h.b16 %v735
    %v817 = vunpack.c.l.b16 %v736
    %v818 = vunpack.c.h.b16 %v736
    %v819 = vunpack.c.l.b16 %v737
    %v820 = vunpack.c.h.b16 %v737
    %v821 = vunpack.c.l.b16 %v738
    %v822 = vunpack.c.h.b16 %v738
    %v823 = vunpack.c.l.b16 %v739
    %v824 = vunpack.c.h.b16 %v739
    %v825 = vunpack.c.l.b16 %v740
    %v826 = vunpack.c.h.b16 %v740
    %v827 = vunpack.c.l.b16 %v741
    %v828 = vunpack.c.h.b16 %v741
    %v829 = vunpack.c.l.b16 %v742
    %v830 = vunpack.c.h.b16 %v742
    %v831 = vunpack.c.l.b16 %v743
    %v832 = vunpack.c.h.b16 %v743
    %v833 = vunpack.c.l.b16 %v744
    %v834 = vunpack.c.h.b16 %v744
    %v835 = vunpack.c.l.b16 %v745
    %v836 = vunpack.c.h.b16 %v745
    %v837 = vunpack.c.l.b16 %v746
    %v838 = vunpack.c.h.b16 %v746
    %v839 = vunpack.c.l.b16 %v747
    %v840 = vunpack.c.h.b16 %v747
    %v841 = vunpack.c.l.b16 %v748
    %v842 = vunpack.c.h.b16 %v748
    %v843 = vunpack.c.l.b16 %v749
    %v844 = vunpack.c.h.b16 %v749
    %v845 = vunpack.c.l.b16 %v750
    %v846 = vunpack.c.h.b16 %v750
    %v847 = vunpack.c.l.b16 %v751
    %v848 = vunpack.c.h.b16 %v751
    %v849 = vunpack.c.l.b16 %v752
    %v850 = vunpack.c.h.b16 %v752
    %v851 = vunpack.c.l.b16 %v753
    %v852 = vunpack.c.h.b16 %v753
    %v853 = vunpack.c.l.b16 %v754
    %v854 = vunpack.c.h.b16 %v754
    %v855 = vunpack.c.l.b16 %v755
    %v856 = vunpack.c.h.b16 %v755
    %v857 = vunpack.c.l.b16 %v756
    %v858 = vunpack.c.h.b16 %v756
    %v859 = vunpack.c.l.b16 %v757
    %v860 = vunpack.c.h.b16 %v757
    %v861 = vpack.c.b16 %v799, %v797
    %v862 = vpack.c.b16 %v800, %v798
    %v863 = vpack.c.b16 %v803, %v801
    %v864 = vpack.c.b16 %v804, %v802
    %v865 = vpack.c.b16 %v807, %v805
    %v866 = vpack.c.b16 %v808, %v806
    %v867 = vpack.c.b16 %v811, %v809
    %v868 = vpack.c.b16 %v812, %v810
    %v869 = vpack.c.b16 %v815, %v813
    %v870 = vpack.c.b16 %v816, %v814
    %v871 = vpack.c.b16 %v819, %v817
    %v872 = vpack.c.b16 %v820, %v818
    %v873 = vpack.c.b16 %v823, %v821
    %v874 = vpack.c.b16 %v824, %v822
    %v875 = vpack.c.b16 %v827, %v825
    %v876 = vpack.c.b16 %v828, %v826
    %v877 = vpack.c.b16 %v831, %v829
    %v878 = vpack.c.b16 %v832, %v830
    %v879 = vpack.c.b16 %v835, %v833
    %v880 = vpack.c.b16 %v836, %v834
    %v881 = vpack.c.b16 %v839, %v837
    %v882 = vpack.c.b16 %v840, %v838
    %v883 = vpack.c.b16 %v843, %v841
    %v884 = vpack.c.b16 %v844, %v842
    %v885 = vpack.c.b16 %v847, %v845
    %v886 = vpack.c.b16 %v848, %v846
    %v887 = vpack.c.b16 %v851, %v849
    %v888 = vpack.c.b16 %v852, %v850
    %v889 = vpack.c.b16 %v855, %v853
    %v890 = vpack.c.b16 %v856, %v854
    %v891 = vpack.c.b16 %v859, %v857
    %v892 = vpack.c.b16 %v860, %v858
    %925 = vmatpush.bf16.msra.mxu0 %v875
    %926 = vmatpush.bf16.msra.mxu0 %v873
    %927 = vmatpush.bf16.msra.mxu0 %v871
    %928 = vmatpush.bf16.msra.mxu0 %v869
    %929 = vmatpush.bf16.msra.mxu0 %v867
    %930 = vmatpush.bf16.msra.mxu0 %v865
    %931 = vmatpush.bf16.msra.mxu0 %v863
    %932 = vmatpush.bf16.msra.mxu0 %v861
    %933 = vmatmul.bf16.gmra.mxu0 %v721
    %v934 = vpop.f32.mrf.mxu0
    %v935 = vadd.f32 %v761, %v934
    %v936 = vpop.f32.mrf.mxu0
    %v937 = vadd.f32 %v761, %v936
    %938 = vmatmul.bf16.gmra.mxu0 %v723
    %v939 = vpop.f32.mrf.mxu0
    %v940 = vadd.f32 %v761, %v939
    %v941 = vpop.f32.mrf.mxu0
    %v942 = vadd.f32 %v761, %v941
    %943 = vdwg.mxu0
    %944 = vmatpush.bf16.msra.mxu0 %v891
    %945 = vmatpush.bf16.msra.mxu0 %v889
    %946 = vmatpush.bf16.msra.mxu0 %v887
    %947 = vmatpush.bf16.msra.mxu0 %v885
    %948 = vmatpush.bf16.msra.mxu0 %v883
    %949 = vmatpush.bf16.msra.mxu0 %v881
    %950 = vmatpush.bf16.msra.mxu0 %v879
    %951 = vmatpush.bf16.msra.mxu0 %v877
    %952 = vmatmul.bf16.gmra.mxu0 %v722
    %v953 = vpop.f32.mrf.mxu0
    %v954 = vadd.f32 %v935, %v953
    %v955 = vpop.f32.mrf.mxu0
    %v956 = vadd.f32 %v937, %v955
    %957 = vmatmul.bf16.gmra.mxu0 %v724
    %v958 = vpop.f32.mrf.mxu0
    %v959 = vadd.f32 %v940, %v958
    %v960 = vpop.f32.mrf.mxu0
    %v961 = vadd.f32 %v942, %v960
    %962 = vdwg.mxu0
    %963 = vmatpush.bf16.msra.mxu0 %v876
    %964 = vmatpush.bf16.msra.mxu0 %v874
    %965 = vmatpush.bf16.msra.mxu0 %v872
    %966 = vmatpush.bf16.msra.mxu0 %v870
    %967 = vmatpush.bf16.msra.mxu0 %v868
    %968 = vmatpush.bf16.msra.mxu0 %v866
    %969 = vmatpush.bf16.msra.mxu0 %v864
    %970 = vmatpush.bf16.msra.mxu0 %v862
    %971 = vmatmul.bf16.gmra.mxu0 %v721
    %v972 = vpop.f32.mrf.mxu0
    %v973 = vadd.f32 %v762, %v972
    %v974 = vpop.f32.mrf.mxu0
    %v975 = vadd.f32 %v762, %v974
    %976 = vmatmul.bf16.gmra.mxu0 %v723
    %v977 = vpop.f32.mrf.mxu0
    %v978 = vadd.f32 %v762, %v977
    %v979 = vpop.f32.mrf.mxu0
    %v980 = vadd.f32 %v762, %v979
    %981 = vdwg.mxu0
    %982 = vmatpush.bf16.msra.mxu0 %v892
    %983 = vmatpush.bf16.msra.mxu0 %v890
    %984 = vmatpush.bf16.msra.mxu0 %v888
    %985 = vmatpush.bf16.msra.mxu0 %v886
    %986 = vmatpush.bf16.msra.mxu0 %v884
    %987 = vmatpush.bf16.msra.mxu0 %v882
    %988 = vmatpush.bf16.msra.mxu0 %v880
    %989 = vmatpush.bf16.msra.mxu0 %v878
    %990 = vmatmul.bf16.gmra.mxu0 %v722
    %v991 = vpop.f32.mrf.mxu0
    %v992 = vadd.f32 %v973, %v991
    %v993 = vpop.f32.mrf.mxu0
    %v994 = vadd.f32 %v975, %v993
    %995 = vmatmul.bf16.gmra.mxu0 %v724
    %v996 = vpop.f32.mrf.mxu0
    %v997 = vadd.f32 %v978, %v996
    %v998 = vpop.f32.mrf.mxu0
    %v999 = vadd.f32 %v980, %v998
    %1000 = vdwg.mxu0
    %v1001 = vmax.f32 %v954, 0.0
    %v1002 = vmax.f32 %v992, 0.0
    %v1003 = vmax.f32 %v956, 0.0
    %v1004 = vmax.f32 %v994, 0.0
    %v1005 = vmax.f32 %v959, 0.0
    %v1006 = vmax.f32 %v997, 0.0
    %v1007 = vmax.f32 %v961, 0.0
    %v1008 = vmax.f32 %v999, 0.0
    %v1009 = vpack.c.bf16 %v1003, %v1001
    %v1010 = vpack.c.bf16 %v1004, %v1002
    %v1011 = vpack.c.bf16 %v1007, %v1005
    %v1012 = vpack.c.bf16 %v1008, %v1006
    %s1013 = scalar_lea.vmem [#allocation8], 256
    %v1014 = vld [vmem:[%s1013] sm:$0xff]
    %v1015 = vld [vmem:[%s1013 + $0x8] sm:$0xff]
    %v1016 = vld [vmem:[%s1013 + $0x10] sm:$0xff]
    %v1017 = vld [vmem:[%s1013 + $0x18] sm:$0xff]
    %v1018 = vld [vmem:[%s1013 + $0x20] sm:$0xff]
    %v1019 = vld [vmem:[%s1013 + $0x28] sm:$0xff]
    %v1020 = vld [vmem:[%s1013 + $0x30] sm:$0xff]
    %v1021 = vld [vmem:[%s1013 + $0x38] sm:$0xff]
    %v1022 = vld [vmem:[%s1013 + $0x40] sm:$0xff]
    %v1023 = vld [vmem:[%s1013 + $0x48] sm:$0xff]
    %v1024 = vld [vmem:[%s1013 + $0x50] sm:$0xff]
    %v1025 = vld [vmem:[%s1013 + $0x58] sm:$0xff]
    %v1026 = vld [vmem:[%s1013 + $0x60] sm:$0xff]
    %v1027 = vld [vmem:[%s1013 + $0x68] sm:$0xff]
    %v1028 = vld [vmem:[%s1013 + $0x70] sm:$0xff]
    %v1029 = vld [vmem:[%s1013 + $0x78] sm:$0xff]
    %v1030 = vld [vmem:[%s1013 + $0x80] sm:$0xff]
    %v1031 = vld [vmem:[%s1013 + $0x88] sm:$0xff]
    %v1032 = vld [vmem:[%s1013 + $0x90] sm:$0xff]
    %v1033 = vld [vmem:[%s1013 + $0x98] sm:$0xff]
    %v1034 = vld [vmem:[%s1013 + $0xa0] sm:$0xff]
    %v1035 = vld [vmem:[%s1013 + $0xa8] sm:$0xff]
    %v1036 = vld [vmem:[%s1013 + $0xb0] sm:$0xff]
    %v1037 = vld [vmem:[%s1013 + $0xb8] sm:$0xff]
    %v1038 = vld [vmem:[%s1013 + $0xc0] sm:$0xff]
    %v1039 = vld [vmem:[%s1013 + $0xc8] sm:$0xff]
    %v1040 = vld [vmem:[%s1013 + $0xd0] sm:$0xff]
    %v1041 = vld [vmem:[%s1013 + $0xd8] sm:$0xff]
    %v1042 = vld [vmem:[%s1013 + $0xe0] sm:$0xff]
    %v1043 = vld [vmem:[%s1013 + $0xe8] sm:$0xff]
    %v1044 = vld [vmem:[%s1013 + $0xf0] sm:$0xff]
    %v1045 = vld [vmem:[%s1013 + $0xf8] sm:$0xff]
    %s1046 = scalar_lea.vmem [#allocation10], 2
    %v1047 = vld [vmem:[%s1046] sm:$0x3]
    %v1049 = vperm.slane %v1047, 0
    %v1050 = vperm.slane %v1047, 1
    %v1085 = vunpack.c.l.b16 %v1014
    %v1086 = vunpack.c.h.b16 %v1014
    %v1087 = vunpack.c.l.b16 %v1015
    %v1088 = vunpack.c.h.b16 %v1015
    %v1089 = vunpack.c.l.b16 %v1016
    %v1090 = vunpack.c.h.b16 %v1016
    %v1091 = vunpack.c.l.b16 %v1017
    %v1092 = vunpack.c.h.b16 %v1017
    %v1093 = vunpack.c.l.b16 %v1018
    %v1094 = vunpack.c.h.b16 %v1018
    %v1095 = vunpack.c.l.b16 %v1019
    %v1096 = vunpack.c.h.b16 %v1019
    %v1097 = vunpack.c.l.b16 %v1020
    %v1098 = vunpack.c.h.b16 %v1020
    %v1099 = vunpack.c.l.b16 %v1021
    %v1100 = vunpack.c.h.b16 %v1021
    %v1101 = vunpack.c.l.b16 %v1022
    %v1102 = vunpack.c.h.b16 %v1022
    %v1103 = vunpack.c.l.b16 %v1023
    %v1104 = vunpack.c.h.b16 %v1023
    %v1105 = vunpack.c.l.b16 %v1024
    %v1106 = vunpack.c.h.b16 %v1024
    %v1107 = vunpack.c.l.b16 %v1025
    %v1108 = vunpack.c.h.b16 %v1025
    %v1109 = vunpack.c.l.b16 %v1026
    %v1110 = vunpack.c.h.b16 %v1026
    %v1111 = vunpack.c.l.b16 %v1027
    %v1112 = vunpack.c.h.b16 %v1027
    %v1113 = vunpack.c.l.b16 %v1028
    %v1114 = vunpack.c.h.b16 %v1028
    %v1115 = vunpack.c.l.b16 %v1029
    %v1116 = vunpack.c.h.b16 %v1029
    %v1117 = vunpack.c.l.b16 %v1030
    %v1118 = vunpack.c.h.b16 %v1030
    %v1119 = vunpack.c.l.b16 %v1031
    %v1120 = vunpack.c.h.b16 %v1031
    %v1121 = vunpack.c.l.b16 %v1032
    %v1122 = vunpack.c.h.b16 %v1032
    %v1123 = vunpack.c.l.b16 %v1033
    %v1124 = vunpack.c.h.b16 %v1033
    %v1125 = vunpack.c.l.b16 %v1034
    %v1126 = vunpack.c.h.b16 %v1034
    %v1127 = vunpack.c.l.b16 %v1035
    %v1128 = vunpack.c.h.b16 %v1035
    %v1129 = vunpack.c.l.b16 %v1036
    %v1130 = vunpack.c.h.b16 %v1036
    %v1131 = vunpack.c.l.b16 %v1037
    %v1132 = vunpack.c.h.b16 %v1037
    %v1133 = vunpack.c.l.b16 %v1038
    %v1134 = vunpack.c.h.b16 %v1038
    %v1135 = vunpack.c.l.b16 %v1039
    %v1136 = vunpack.c.h.b16 %v1039
    %v1137 = vunpack.c.l.b16 %v1040
    %v1138 = vunpack.c.h.b16 %v1040
    %v1139 = vunpack.c.l.b16 %v1041
    %v1140 = vunpack.c.h.b16 %v1041
    %v1141 = vunpack.c.l.b16 %v1042
    %v1142 = vunpack.c.h.b16 %v1042
    %v1143 = vunpack.c.l.b16 %v1043
    %v1144 = vunpack.c.h.b16 %v1043
    %v1145 = vunpack.c.l.b16 %v1044
    %v1146 = vunpack.c.h.b16 %v1044
    %v1147 = vunpack.c.l.b16 %v1045
    %v1148 = vunpack.c.h.b16 %v1045
    %v1149 = vpack.c.b16 %v1087, %v1085
    %v1150 = vpack.c.b16 %v1088, %v1086
    %v1151 = vpack.c.b16 %v1091, %v1089
    %v1152 = vpack.c.b16 %v1092, %v1090
    %v1153 = vpack.c.b16 %v1095, %v1093
    %v1154 = vpack.c.b16 %v1096, %v1094
    %v1155 = vpack.c.b16 %v1099, %v1097
    %v1156 = vpack.c.b16 %v1100, %v1098
    %v1157 = vpack.c.b16 %v1103, %v1101
    %v1158 = vpack.c.b16 %v1104, %v1102
    %v1159 = vpack.c.b16 %v1107, %v1105
    %v1160 = vpack.c.b16 %v1108, %v1106
    %v1161 = vpack.c.b16 %v1111, %v1109
    %v1162 = vpack.c.b16 %v1112, %v1110
    %v1163 = vpack.c.b16 %v1115, %v1113
    %v1164 = vpack.c.b16 %v1116, %v1114
    %v1165 = vpack.c.b16 %v1119, %v1117
    %v1166 = vpack.c.b16 %v1120, %v1118
    %v1167 = vpack.c.b16 %v1123, %v1121
    %v1168 = vpack.c.b16 %v1124, %v1122
    %v1169 = vpack.c.b16 %v1127, %v1125
    %v1170 = vpack.c.b16 %v1128, %v1126
    %v1171 = vpack.c.b16 %v1131, %v1129
    %v1172 = vpack.c.b16 %v1132, %v1130
    %v1173 = vpack.c.b16 %v1135, %v1133
    %v1174 = vpack.c.b16 %v1136, %v1134
    %v1175 = vpack.c.b16 %v1139, %v1137
    %v1176 = vpack.c.b16 %v1140, %v1138
    %v1177 = vpack.c.b16 %v1143, %v1141
    %v1178 = vpack.c.b16 %v1144, %v1142
    %v1179 = vpack.c.b16 %v1147, %v1145
    %v1180 = vpack.c.b16 %v1148, %v1146
    %1213 = vmatpush.bf16.msra.mxu0 %v1163
    %1214 = vmatpush.bf16.msra.mxu0 %v1161
    %1215 = vmatpush.bf16.msra.mxu0 %v1159
    %1216 = vmatpush.bf16.msra.mxu0 %v1157
    %1217 = vmatpush.bf16.msra.mxu0 %v1155
    %1218 = vmatpush.bf16.msra.mxu0 %v1153
    %1219 = vmatpush.bf16.msra.mxu0 %v1151
    %1220 = vmatpush.bf16.msra.mxu0 %v1149
    %1221 = vmatmul.bf16.gmra.mxu0 %v1009
    %v1222 = vpop.f32.mrf.mxu0
    %v1223 = vadd.f32 %v1049, %v1222
    %v1224 = vpop.f32.mrf.mxu0
    %v1225 = vadd.f32 %v1049, %v1224
    %1226 = vmatmul.bf16.gmra.mxu0 %v1011
    %v1227 = vpop.f32.mrf.mxu0
    %v1228 = vadd.f32 %v1049, %v1227
    %v1229 = vpop.f32.mrf.mxu0
    %v1230 = vadd.f32 %v1049, %v1229
    %1231 = vdwg.mxu0
    %1232 = vmatpush.bf16.msra.mxu0 %v1179
    %1233 = vmatpush.bf16.msra.mxu0 %v1177
    %1234 = vmatpush.bf16.msra.mxu0 %v1175
    %1235 = vmatpush.bf16.msra.mxu0 %v1173
    %1236 = vmatpush.bf16.msra.mxu0 %v1171
    %1237 = vmatpush.bf16.msra.mxu0 %v1169
    %1238 = vmatpush.bf16.msra.mxu0 %v1167
    %1239 = vmatpush.bf16.msra.mxu0 %v1165
    %1240 = vmatmul.bf16.gmra.mxu0 %v1010
    %v1241 = vpop.f32.mrf.mxu0
    %v1242 = vadd.f32 %v1223, %v1241
    %v1243 = vpop.f32.mrf.mxu0
    %v1244 = vadd.f32 %v1225, %v1243
    %1245 = vmatmul.bf16.gmra.mxu0 %v1012
    %v1246 = vpop.f32.mrf.mxu0
    %v1247 = vadd.f32 %v1228, %v1246
    %v1248 = vpop.f32.mrf.mxu0
    %v1249 = vadd.f32 %v1230, %v1248
    %1250 = vdwg.mxu0
    %1251 = vmatpush.bf16.msra.mxu0 %v1164
    %1252 = vmatpush.bf16.msra.mxu0 %v1162
    %1253 = vmatpush.bf16.msra.mxu0 %v1160
    %1254 = vmatpush.bf16.msra.mxu0 %v1158
    %1255 = vmatpush.bf16.msra.mxu0 %v1156
    %1256 = vmatpush.bf16.msra.mxu0 %v1154
    %1257 = vmatpush.bf16.msra.mxu0 %v1152
    %1258 = vmatpush.bf16.msra.mxu0 %v1150
    %1259 = vmatmul.bf16.gmra.mxu0 %v1009
    %v1260 = vpop.f32.mrf.mxu0
    %v1261 = vadd.f32 %v1050, %v1260
    %v1262 = vpop.f32.mrf.mxu0
    %v1263 = vadd.f32 %v1050, %v1262
    %1264 = vmatmul.bf16.gmra.mxu0 %v1011
    %v1265 = vpop.f32.mrf.mxu0
    %v1266 = vadd.f32 %v1050, %v1265
    %v1267 = vpop.f32.mrf.mxu0
    %v1268 = vadd.f32 %v1050, %v1267
    %1269 = vdwg.mxu0
    %1270 = vmatpush.bf16.msra.mxu0 %v1180
    %1271 = vmatpush.bf16.msra.mxu0 %v1178
    %1272 = vmatpush.bf16.msra.mxu0 %v1176
    %1273 = vmatpush.bf16.msra.mxu0 %v1174
    %1274 = vmatpush.bf16.msra.mxu0 %v1172
    %1275 = vmatpush.bf16.msra.mxu0 %v1170
    %1276 = vmatpush.bf16.msra.mxu0 %v1168
    %1277 = vmatpush.bf16.msra.mxu0 %v1166
    %1278 = vmatmul.bf16.gmra.mxu0 %v1010
    %v1279 = vpop.f32.mrf.mxu0
    %v1280 = vadd.f32 %v1261, %v1279
    %v1281 = vpop.f32.mrf.mxu0
    %v1282 = vadd.f32 %v1263, %v1281
    %1283 = vmatmul.bf16.gmra.mxu0 %v1012
    %v1284 = vpop.f32.mrf.mxu0
    %v1285 = vadd.f32 %v1266, %v1284
    %v1286 = vpop.f32.mrf.mxu0
    %v1287 = vadd.f32 %v1268, %v1286
    %1288 = vdwg.mxu0
    %v1289 = vadd.f32 %v713, %v1242
    %v1290 = vadd.f32 %v714, %v1280
    %v1291 = vadd.f32 %v715, %v1244
    %v1292 = vadd.f32 %v716, %v1282
    %v1293 = vadd.f32 %v717, %v1247
    %v1294 = vadd.f32 %v718, %v1285
    %v1295 = vadd.f32 %v719, %v1249
    %v1296 = vadd.f32 %v720, %v1287
    %v1297 = vpack.c.bf16 %v1291, %v1289
    %v1298 = vpack.c.bf16 %v1292, %v1290
    %v1299 = vpack.c.bf16 %v1295, %v1293
    %v1300 = vpack.c.bf16 %v1296, %v1294
    %s1301 = scalar_lea.vmem [#allocation5], 512
    %v1302 = vld [vmem:[%s1301] sm:$0xff]
    %v1303 = vld [vmem:[%s1301 + $0x8] sm:$0xff]
    %v1304 = vld [vmem:[%s1301 + $0x10] sm:$0xff]
    %v1305 = vld [vmem:[%s1301 + $0x18] sm:$0xff]
    %v1306 = vld [vmem:[%s1301 + $0x20] sm:$0xff]
    %v1307 = vld [vmem:[%s1301 + $0x28] sm:$0xff]
    %v1308 = vld [vmem:[%s1301 + $0x30] sm:$0xff]
    %v1309 = vld [vmem:[%s1301 + $0x38] sm:$0xff]
    %v1310 = vld [vmem:[%s1301 + $0x40] sm:$0xff]
    %v1311 = vld [vmem:[%s1301 + $0x48] sm:$0xff]
    %v1312 = vld [vmem:[%s1301 + $0x50] sm:$0xff]
    %v1313 = vld [vmem:[%s1301 + $0x58] sm:$0xff]
    %v1314 = vld [vmem:[%s1301 + $0x60] sm:$0xff]
    %v1315 = vld [vmem:[%s1301 + $0x68] sm:$0xff]
    %v1316 = vld [vmem:[%s1301 + $0x70] sm:$0xff]
    %v1317 = vld [vmem:[%s1301 + $0x78] sm:$0xff]
    %v1318 = vld [vmem:[%s1301 + $0x80] sm:$0xff]
    %v1319 = vld [vmem:[%s1301 + $0x88] sm:$0xff]
    %v1320 = vld [vmem:[%s1301 + $0x90] sm:$0xff]
    %v1321 = vld [vmem:[%s1301 + $0x98] sm:$0xff]
    %v1322 = vld [vmem:[%s1301 + $0xa0] sm:$0xff]
    %v1323 = vld [vmem:[%s1301 + $0xa8] sm:$0xff]
    %v1324 = vld [vmem:[%s1301 + $0xb0] sm:$0xff]
    %v1325 = vld [vmem:[%s1301 + $0xb8] sm:$0xff]
    %v1326 = vld [vmem:[%s1301 + $0xc0] sm:$0xff]
    %v1327 = vld [vmem:[%s1301 + $0xc8] sm:$0xff]
    %v1328 = vld [vmem:[%s1301 + $0xd0] sm:$0xff]
    %v1329 = vld [vmem:[%s1301 + $0xd8] sm:$0xff]
    %v1330 = vld [vmem:[%s1301 + $0xe0] sm:$0xff]
    %v1331 = vld [vmem:[%s1301 + $0xe8] sm:$0xff]
    %v1332 = vld [vmem:[%s1301 + $0xf0] sm:$0xff]
    %v1333 = vld [vmem:[%s1301 + $0xf8] sm:$0xff]
    %s1334 = scalar_lea.vmem [#allocation7], 4
    %v1335 = vld [vmem:[%s1334] sm:$0x3]
    %v1337 = vperm.slane %v1335, 0
    %v1338 = vperm.slane %v1335, 1
    %v1373 = vunpack.c.l.b16 %v1302
    %v1374 = vunpack.c.h.b16 %v1302
    %v1375 = vunpack.c.l.b16 %v1303
    %v1376 = vunpack.c.h.b16 %v1303
    %v1377 = vunpack.c.l.b16 %v1304
    %v1378 = vunpack.c.h.b16 %v1304
    %v1379 = vunpack.c.l.b16 %v1305
    %v1380 = vunpack.c.h.b16 %v1305
    %v1381 = vunpack.c.l.b16 %v1306
    %v1382 = vunpack.c.h.b16 %v1306
    %v1383 = vunpack.c.l.b16 %v1307
    %v1384 = vunpack.c.h.b16 %v1307
    %v1385 = vunpack.c.l.b16 %v1308
    %v1386 = vunpack.c.h.b16 %v1308
    %v1387 = vunpack.c.l.b16 %v1309
    %v1388 = vunpack.c.h.b16 %v1309
    %v1389 = vunpack.c.l.b16 %v1310
    %v1390 = vunpack.c.h.b16 %v1310
    %v1391 = vunpack.c.l.b16 %v1311
    %v1392 = vunpack.c.h.b16 %v1311
    %v1393 = vunpack.c.l.b16 %v1312
    %v1394 = vunpack.c.h.b16 %v1312
    %v1395 = vunpack.c.l.b16 %v1313
    %v1396 = vunpack.c.h.b16 %v1313
    %v1397 = vunpack.c.l.b16 %v1314
    %v1398 = vunpack.c.h.b16 %v1314
    %v1399 = vunpack.c.l.b16 %v1315
    %v1400 = vunpack.c.h.b16 %v1315
    %v1401 = vunpack.c.l.b16 %v1316
    %v1402 = vunpack.c.h.b16 %v1316
    %v1403 = vunpack.c.l.b16 %v1317
    %v1404 = vunpack.c.h.b16 %v1317
    %v1405 = vunpack.c.l.b16 %v1318
    %v1406 = vunpack.c.h.b16 %v1318
    %v1407 = vunpack.c.l.b16 %v1319
    %v1408 = vunpack.c.h.b16 %v1319
    %v1409 = vunpack.c.l.b16 %v1320
    %v1410 = vunpack.c.h.b16 %v1320
    %v1411 = vunpack.c.l.b16 %v1321
    %v1412 = vunpack.c.h.b16 %v1321
    %v1413 = vunpack.c.l.b16 %v1322
    %v1414 = vunpack.c.h.b16 %v1322
    %v1415 = vunpack.c.l.b16 %v1323
    %v1416 = vunpack.c.h.b16 %v1323
    %v1417 = vunpack.c.l.b16 %v1324
    %v1418 = vunpack.c.h.b16 %v1324
    %v1419 = vunpack.c.l.b16 %v1325
    %v1420 = vunpack.c.h.b16 %v1325
    %v1421 = vunpack.c.l.b16 %v1326
    %v1422 = vunpack.c.h.b16 %v1326
    %v1423 = vunpack.c.l.b16 %v1327
    %v1424 = vunpack.c.h.b16 %v1327
    %v1425 = vunpack.c.l.b16 %v1328
    %v1426 = vunpack.c.h.b16 %v1328
    %v1427 = vunpack.c.l.b16 %v1329
    %v1428 = vunpack.c.h.b16 %v1329
    %v1429 = vunpack.c.l.b16 %v1330
    %v1430 = vunpack.c.h.b16 %v1330
    %v1431 = vunpack.c.l.b16 %v1331
    %v1432 = vunpack.c.h.b16 %v1331
    %v1433 = vunpack.c.l.b16 %v1332
    %v1434 = vunpack.c.h.b16 %v1332
    %v1435 = vunpack.c.l.b16 %v1333
    %v1436 = vunpack.c.h.b16 %v1333
    %v1437 = vpack.c.b16 %v1375, %v1373
    %v1438 = vpack.c.b16 %v1376, %v1374
    %v1439 = vpack.c.b16 %v1379, %v1377
    %v1440 = vpack.c.b16 %v1380, %v1378
    %v1441 = vpack.c.b16 %v1383, %v1381
    %v1442 = vpack.c.b16 %v1384, %v1382
    %v1443 = vpack.c.b16 %v1387, %v1385
    %v1444 = vpack.c.b16 %v1388, %v1386
    %v1445 = vpack.c.b16 %v1391, %v1389
    %v1446 = vpack.c.b16 %v1392, %v1390
    %v1447 = vpack.c.b16 %v1395, %v1393
    %v1448 = vpack.c.b16 %v1396, %v1394
    %v1449 = vpack.c.b16 %v1399, %v1397
    %v1450 = vpack.c.b16 %v1400, %v1398
    %v1451 = vpack.c.b16 %v1403, %v1401
    %v1452 = vpack.c.b16 %v1404, %v1402
    %v1453 = vpack.c.b16 %v1407, %v1405
    %v1454 = vpack.c.b16 %v1408, %v1406
    %v1455 = vpack.c.b16 %v1411, %v1409
    %v1456 = vpack.c.b16 %v1412, %v1410
    %v1457 = vpack.c.b16 %v1415, %v1413
    %v1458 = vpack.c.b16 %v1416, %v1414
    %v1459 = vpack.c.b16 %v1419, %v1417
    %v1460 = vpack.c.b16 %v1420, %v1418
    %v1461 = vpack.c.b16 %v1423, %v1421
    %v1462 = vpack.c.b16 %v1424, %v1422
    %v1463 = vpack.c.b16 %v1427, %v1425
    %v1464 = vpack.c.b16 %v1428, %v1426
    %v1465 = vpack.c.b16 %v1431, %v1429
    %v1466 = vpack.c.b16 %v1432, %v1430
    %v1467 = vpack.c.b16 %v1435, %v1433
    %v1468 = vpack.c.b16 %v1436, %v1434
    %1501 = vmatpush.bf16.msra.mxu0 %v1451
    %1502 = vmatpush.bf16.msra.mxu0 %v1449
    %1503 = vmatpush.bf16.msra.mxu0 %v1447
    %1504 = vmatpush.bf16.msra.mxu0 %v1445
    %1505 = vmatpush.bf16.msra.mxu0 %v1443
    %1506 = vmatpush.bf16.msra.mxu0 %v1441
    %1507 = vmatpush.bf16.msra.mxu0 %v1439
    %1508 = vmatpush.bf16.msra.mxu0 %v1437
    %1509 = vmatmul.bf16.gmra.mxu0 %v1297
    %v1510 = vpop.f32.mrf.mxu0
    %v1511 = vadd.f32 %v1337, %v1510
    %v1512 = vpop.f32.mrf.mxu0
    %v1513 = vadd.f32 %v1337, %v1512
    %1514 = vmatmul.bf16.gmra.mxu0 %v1299
    %v1515 = vpop.f32.mrf.mxu0
    %v1516 = vadd.f32 %v1337, %v1515
    %v1517 = vpop.f32.mrf.mxu0
    %v1518 = vadd.f32 %v1337, %v1517
    %1519 = vdwg.mxu0
    %1520 = vmatpush.bf16.msra.mxu0 %v1467
    %1521 = vmatpush.bf16.msra.mxu0 %v1465
    %1522 = vmatpush.bf16.msra.mxu0 %v1463
    %1523 = vmatpush.bf16.msra.mxu0 %v1461
    %1524 = vmatpush.bf16.msra.mxu0 %v1459
    %1525 = vmatpush.bf16.msra.mxu0 %v1457
    %1526 = vmatpush.bf16.msra.mxu0 %v1455
    %1527 = vmatpush.bf16.msra.mxu0 %v1453
    %1528 = vmatmul.bf16.gmra.mxu0 %v1298
    %v1529 = vpop.f32.mrf.mxu0
    %v1530 = vadd.f32 %v1511, %v1529
    %v1531 = vpop.f32.mrf.mxu0
    %v1532 = vadd.f32 %v1513, %v1531
    %1533 = vmatmul.bf16.gmra.mxu0 %v1300
    %v1534 = vpop.f32.mrf.mxu0
    %v1535 = vadd.f32 %v1516, %v1534
    %v1536 = vpop.f32.mrf.mxu0
    %v1537 = vadd.f32 %v1518, %v1536
    %1538 = vdwg.mxu0
    %1539 = vmatpush.bf16.msra.mxu0 %v1452
    %1540 = vmatpush.bf16.msra.mxu0 %v1450
    %1541 = vmatpush.bf16.msra.mxu0 %v1448
    %1542 = vmatpush.bf16.msra.mxu0 %v1446
    %1543 = vmatpush.bf16.msra.mxu0 %v1444
    %1544 = vmatpush.bf16.msra.mxu0 %v1442
    %1545 = vmatpush.bf16.msra.mxu0 %v1440
    %1546 = vmatpush.bf16.msra.mxu0 %v1438
    %1547 = vmatmul.bf16.gmra.mxu0 %v1297
    %v1548 = vpop.f32.mrf.mxu0
    %v1549 = vadd.f32 %v1338, %v1548
    %v1550 = vpop.f32.mrf.mxu0
    %v1551 = vadd.f32 %v1338, %v1550
    %1552 = vmatmul.bf16.gmra.mxu0 %v1299
    %v1553 = vpop.f32.mrf.mxu0
    %v1554 = vadd.f32 %v1338, %v1553
    %v1555 = vpop.f32.mrf.mxu0
    %v1556 = vadd.f32 %v1338, %v1555
    %1557 = vdwg.mxu0
    %1558 = vmatpush.bf16.msra.mxu0 %v1468
    %1559 = vmatpush.bf16.msra.mxu0 %v1466
    %1560 = vmatpush.bf16.msra.mxu0 %v1464
    %1561 = vmatpush.bf16.msra.mxu0 %v1462
    %1562 = vmatpush.bf16.msra.mxu0 %v1460
    %1563 = vmatpush.bf16.msra.mxu0 %v1458
    %1564 = vmatpush.bf16.msra.mxu0 %v1456
    %1565 = vmatpush.bf16.msra.mxu0 %v1454
    %1566 = vmatmul.bf16.gmra.mxu0 %v1298
    %v1567 = vpop.f32.mrf.mxu0
    %v1568 = vadd.f32 %v1549, %v1567
    %v1569 = vpop.f32.mrf.mxu0
    %v1570 = vadd.f32 %v1551, %v1569
    %1571 = vmatmul.bf16.gmra.mxu0 %v1300
    %v1572 = vpop.f32.mrf.mxu0
    %v1573 = vadd.f32 %v1554, %v1572
    %v1574 = vpop.f32.mrf.mxu0
    %v1575 = vadd.f32 %v1556, %v1574
    %1576 = vdwg.mxu0
    %v1577 = vmax.f32 %v1530, 0.0
    %v1578 = vmax.f32 %v1568, 0.0
    %v1579 = vmax.f32 %v1532, 0.0
    %v1580 = vmax.f32 %v1570, 0.0
    %v1581 = vmax.f32 %v1535, 0.0
    %v1582 = vmax.f32 %v1573, 0.0
    %v1583 = vmax.f32 %v1537, 0.0
    %v1584 = vmax.f32 %v1575, 0.0
    %v1585 = vpack.c.bf16 %v1579, %v1577
    %v1586 = vpack.c.bf16 %v1580, %v1578
    %v1587 = vpack.c.bf16 %v1583, %v1581
    %v1588 = vpack.c.bf16 %v1584, %v1582
    %s1589 = scalar_lea.vmem [#allocation8], 512
    %v1590 = vld [vmem:[%s1589] sm:$0xff]
    %v1591 = vld [vmem:[%s1589 + $0x8] sm:$0xff]
    %v1592 = vld [vmem:[%s1589 + $0x10] sm:$0xff]
    %v1593 = vld [vmem:[%s1589 + $0x18] sm:$0xff]
    %v1594 = vld [vmem:[%s1589 + $0x20] sm:$0xff]
    %v1595 = vld [vmem:[%s1589 + $0x28] sm:$0xff]
    %v1596 = vld [vmem:[%s1589 + $0x30] sm:$0xff]
    %v1597 = vld [vmem:[%s1589 + $0x38] sm:$0xff]
    %v1598 = vld [vmem:[%s1589 + $0x40] sm:$0xff]
    %v1599 = vld [vmem:[%s1589 + $0x48] sm:$0xff]
    %v1600 = vld [vmem:[%s1589 + $0x50] sm:$0xff]
    %v1601 = vld [vmem:[%s1589 + $0x58] sm:$0xff]
    %v1602 = vld [vmem:[%s1589 + $0x60] sm:$0xff]
    %v1603 = vld [vmem:[%s1589 + $0x68] sm:$0xff]
    %v1604 = vld [vmem:[%s1589 + $0x70] sm:$0xff]
    %v1605 = vld [vmem:[%s1589 + $0x78] sm:$0xff]
    %v1606 = vld [vmem:[%s1589 + $0x80] sm:$0xff]
    %v1607 = vld [vmem:[%s1589 + $0x88] sm:$0xff]
    %v1608 = vld [vmem:[%s1589 + $0x90] sm:$0xff]
    %v1609 = vld [vmem:[%s1589 + $0x98] sm:$0xff]
    %v1610 = vld [vmem:[%s1589 + $0xa0] sm:$0xff]
    %v1611 = vld [vmem:[%s1589 + $0xa8] sm:$0xff]
    %v1612 = vld [vmem:[%s1589 + $0xb0] sm:$0xff]
    %v1613 = vld [vmem:[%s1589 + $0xb8] sm:$0xff]
    %v1614 = vld [vmem:[%s1589 + $0xc0] sm:$0xff]
    %v1615 = vld [vmem:[%s1589 + $0xc8] sm:$0xff]
    %v1616 = vld [vmem:[%s1589 + $0xd0] sm:$0xff]
    %v1617 = vld [vmem:[%s1589 + $0xd8] sm:$0xff]
    %v1618 = vld [vmem:[%s1589 + $0xe0] sm:$0xff]
    %v1619 = vld [vmem:[%s1589 + $0xe8] sm:$0xff]
    %v1620 = vld [vmem:[%s1589 + $0xf0] sm:$0xff]
    %v1621 = vld [vmem:[%s1589 + $0xf8] sm:$0xff]
    %s1622 = scalar_lea.vmem [#allocation10], 4
    %v1623 = vld [vmem:[%s1622] sm:$0x3]
    %v1625 = vperm.slane %v1623, 0
    %v1626 = vperm.slane %v1623, 1
    %v1661 = vunpack.c.l.b16 %v1590
    %v1662 = vunpack.c.h.b16 %v1590
    %v1663 = vunpack.c.l.b16 %v1591
    %v1664 = vunpack.c.h.b16 %v1591
    %v1665 = vunpack.c.l.b16 %v1592
    %v1666 = vunpack.c.h.b16 %v1592
    %v1667 = vunpack.c.l.b16 %v1593
    %v1668 = vunpack.c.h.b16 %v1593
    %v1669 = vunpack.c.l.b16 %v1594
    %v1670 = vunpack.c.h.b16 %v1594
    %v1671 = vunpack.c.l.b16 %v1595
    %v1672 = vunpack.c.h.b16 %v1595
    %v1673 = vunpack.c.l.b16 %v1596
    %v1674 = vunpack.c.h.b16 %v1596
    %v1675 = vunpack.c.l.b16 %v1597
    %v1676 = vunpack.c.h.b16 %v1597
    %v1677 = vunpack.c.l.b16 %v1598
    %v1678 = vunpack.c.h.b16 %v1598
    %v1679 = vunpack.c.l.b16 %v1599
    %v1680 = vunpack.c.h.b16 %v1599
    %v1681 = vunpack.c.l.b16 %v1600
    %v1682 = vunpack.c.h.b16 %v1600
    %v1683 = vunpack.c.l.b16 %v1601
    %v1684 = vunpack.c.h.b16 %v1601
    %v1685 = vunpack.c.l.b16 %v1602
    %v1686 = vunpack.c.h.b16 %v1602
    %v1687 = vunpack.c.l.b16 %v1603
    %v1688 = vunpack.c.h.b16 %v1603
    %v1689 = vunpack.c.l.b16 %v1604
    %v1690 = vunpack.c.h.b16 %v1604
    %v1691 = vunpack.c.l.b16 %v1605
    %v1692 = vunpack.c.h.b16 %v1605
    %v1693 = vunpack.c.l.b16 %v1606
    %v1694 = vunpack.c.h.b16 %v1606
    %v1695 = vunpack.c.l.b16 %v1607
    %v1696 = vunpack.c.h.b16 %v1607
    %v1697 = vunpack.c.l.b16 %v1608
    %v1698 = vunpack.c.h.b16 %v1608
    %v1699 = vunpack.c.l.b16 %v1609
    %v1700 = vunpack.c.h.b16 %v1609
    %v1701 = vunpack.c.l.b16 %v1610
    %v1702 = vunpack.c.h.b16 %v1610
    %v1703 = vunpack.c.l.b16 %v1611
    %v1704 = vunpack.c.h.b16 %v1611
    %v1705 = vunpack.c.l.b16 %v1612
    %v1706 = vunpack.c.h.b16 %v1612
    %v1707 = vunpack.c.l.b16 %v1613
    %v1708 = vunpack.c.h.b16 %v1613
    %v1709 = vunpack.c.l.b16 %v1614
    %v1710 = vunpack.c.h.b16 %v1614
    %v1711 = vunpack.c.l.b16 %v1615
    %v1712 = vunpack.c.h.b16 %v1615
    %v1713 = vunpack.c.l.b16 %v1616
    %v1714 = vunpack.c.h.b16 %v1616
    %v1715 = vunpack.c.l.b16 %v1617
    %v1716 = vunpack.c.h.b16 %v1617
    %v1717 = vunpack.c.l.b16 %v1618
    %v1718 = vunpack.c.h.b16 %v1618
    %v1719 = vunpack.c.l.b16 %v1619
    %v1720 = vunpack.c.h.b16 %v1619
    %v1721 = vunpack.c.l.b16 %v1620
    %v1722 = vunpack.c.h.b16 %v1620
    %v1723 = vunpack.c.l.b16 %v1621
    %v1724 = vunpack.c.h.b16 %v1621
    %v1725 = vpack.c.b16 %v1663, %v1661
    %v1726 = vpack.c.b16 %v1664, %v1662
    %v1727 = vpack.c.b16 %v1667, %v1665
    %v1728 = vpack.c.b16 %v1668, %v1666
    %v1729 = vpack.c.b16 %v1671, %v1669
    %v1730 = vpack.c.b16 %v1672, %v1670
    %v1731 = vpack.c.b16 %v1675, %v1673
    %v1732 = vpack.c.b16 %v1676, %v1674
    %v1733 = vpack.c.b16 %v1679, %v1677
    %v1734 = vpack.c.b16 %v1680, %v1678
    %v1735 = vpack.c.b16 %v1683, %v1681
    %v1736 = vpack.c.b16 %v1684, %v1682
    %v1737 = vpack.c.b16 %v1687, %v1685
    %v1738 = vpack.c.b16 %v1688, %v1686
    %v1739 = vpack.c.b16 %v1691, %v1689
    %v1740 = vpack.c.b16 %v1692, %v1690
    %v1741 = vpack.c.b16 %v1695, %v1693
    %v1742 = vpack.c.b16 %v1696, %v1694
    %v1743 = vpack.c.b16 %v1699, %v1697
    %v1744 = vpack.c.b16 %v1700, %v1698
    %v1745 = vpack.c.b16 %v1703, %v1701
    %v1746 = vpack.c.b16 %v1704, %v1702
    %v1747 = vpack.c.b16 %v1707, %v1705
    %v1748 = vpack.c.b16 %v1708, %v1706
    %v1749 = vpack.c.b16 %v1711, %v1709
    %v1750 = vpack.c.b16 %v1712, %v1710
    %v1751 = vpack.c.b16 %v1715, %v1713
    %v1752 = vpack.c.b16 %v1716, %v1714
    %v1753 = vpack.c.b16 %v1719, %v1717
    %v1754 = vpack.c.b16 %v1720, %v1718
    %v1755 = vpack.c.b16 %v1723, %v1721
    %v1756 = vpack.c.b16 %v1724, %v1722
    %1789 = vmatpush.bf16.msra.mxu0 %v1739
    %1790 = vmatpush.bf16.msra.mxu0 %v1737
    %1791 = vmatpush.bf16.msra.mxu0 %v1735
    %1792 = vmatpush.bf16.msra.mxu0 %v1733
    %1793 = vmatpush.bf16.msra.mxu0 %v1731
    %1794 = vmatpush.bf16.msra.mxu0 %v1729
    %1795 = vmatpush.bf16.msra.mxu0 %v1727
    %1796 = vmatpush.bf16.msra.mxu0 %v1725
    %1797 = vmatmul.bf16.gmra.mxu0 %v1585
    %v1798 = vpop.f32.mrf.mxu0
    %v1799 = vadd.f32 %v1625, %v1798
    %v1800 = vpop.f32.mrf.mxu0
    %v1801 = vadd.f32 %v1625, %v1800
    %1802 = vmatmul.bf16.gmra.mxu0 %v1587
    %v1803 = vpop.f32.mrf.mxu0
    %v1804 = vadd.f32 %v1625, %v1803
    %v1805 = vpop.f32.mrf.mxu0
    %v1806 = vadd.f32 %v1625, %v1805
    %1807 = vdwg.mxu0
    %1808 = vmatpush.bf16.msra.mxu0 %v1755
    %1809 = vmatpush.bf16.msra.mxu0 %v1753
    %1810 = vmatpush.bf16.msra.mxu0 %v1751
    %1811 = vmatpush.bf16.msra.mxu0 %v1749
    %1812 = vmatpush.bf16.msra.mxu0 %v1747
    %1813 = vmatpush.bf16.msra.mxu0 %v1745
    %1814 = vmatpush.bf16.msra.mxu0 %v1743
    %1815 = vmatpush.bf16.msra.mxu0 %v1741
    %1816 = vmatmul.bf16.gmra.mxu0 %v1586
    %v1817 = vpop.f32.mrf.mxu0
    %v1818 = vadd.f32 %v1799, %v1817
    %v1819 = vpop.f32.mrf.mxu0
    %v1820 = vadd.f32 %v1801, %v1819
    %1821 = vmatmul.bf16.gmra.mxu0 %v1588
    %v1822 = vpop.f32.mrf.mxu0
    %v1823 = vadd.f32 %v1804, %v1822
    %v1824 = vpop.f32.mrf.mxu0
    %v1825 = vadd.f32 %v1806, %v1824
    %1826 = vdwg.mxu0
    %1827 = vmatpush.bf16.msra.mxu0 %v1740
    %1828 = vmatpush.bf16.msra.mxu0 %v1738
    %1829 = vmatpush.bf16.msra.mxu0 %v1736
    %1830 = vmatpush.bf16.msra.mxu0 %v1734
    %1831 = vmatpush.bf16.msra.mxu0 %v1732
    %1832 = vmatpush.bf16.msra.mxu0 %v1730
    %1833 = vmatpush.bf16.msra.mxu0 %v1728
    %1834 = vmatpush.bf16.msra.mxu0 %v1726
    %1835 = vmatmul.bf16.gmra.mxu0 %v1585
    %v1836 = vpop.f32.mrf.mxu0
    %v1837 = vadd.f32 %v1626, %v1836
    %v1838 = vpop.f32.mrf.mxu0
    %v1839 = vadd.f32 %v1626, %v1838
    %1840 = vmatmul.bf16.gmra.mxu0 %v1587
    %v1841 = vpop.f32.mrf.mxu0
    %v1842 = vadd.f32 %v1626, %v1841
    %v1843 = vpop.f32.mrf.mxu0
    %v1844 = vadd.f32 %v1626, %v1843
    %1845 = vdwg.mxu0
    %1846 = vmatpush.bf16.msra.mxu0 %v1756
    %1847 = vmatpush.bf16.msra.mxu0 %v1754
    %1848 = vmatpush.bf16.msra.mxu0 %v1752
    %1849 = vmatpush.bf16.msra.mxu0 %v1750
    %1850 = vmatpush.bf16.msra.mxu0 %v1748
    %1851 = vmatpush.bf16.msra.mxu0 %v1746
    %1852 = vmatpush.bf16.msra.mxu0 %v1744
    %1853 = vmatpush.bf16.msra.mxu0 %v1742
    %1854 = vmatmul.bf16.gmra.mxu0 %v1586
    %v1855 = vpop.f32.mrf.mxu0
    %v1856 = vadd.f32 %v1837, %v1855
    %v1857 = vpop.f32.mrf.mxu0
    %v1858 = vadd.f32 %v1839, %v1857
    %1859 = vmatmul.bf16.gmra.mxu0 %v1588
    %v1860 = vpop.f32.mrf.mxu0
    %v1861 = vadd.f32 %v1842, %v1860
    %v1862 = vpop.f32.mrf.mxu0
    %v1863 = vadd.f32 %v1844, %v1862
    %1864 = vdwg.mxu0
    %v1865 = vadd.f32 %v1289, %v1818
    %v1866 = vadd.f32 %v1290, %v1856
    %v1867 = vadd.f32 %v1291, %v1820
    %v1868 = vadd.f32 %v1292, %v1858
    %v1869 = vadd.f32 %v1293, %v1823
    %v1870 = vadd.f32 %v1294, %v1861
    %v1871 = vadd.f32 %v1295, %v1825
    %v1872 = vadd.f32 %v1296, %v1863
    %v1873 = vpack.c.bf16 %v1867, %v1865
    %v1874 = vpack.c.bf16 %v1868, %v1866
    %v1875 = vpack.c.bf16 %v1871, %v1869
    %v1876 = vpack.c.bf16 %v1872, %v1870
    %v1877 = vld [vmem:[#allocation11] sm:$0xff]
    %v1878 = vld [vmem:[#allocation11 + $0x8] sm:$0xff]
    %v1879 = vld [vmem:[#allocation11 + $0x10] sm:$0xff]
    %v1880 = vld [vmem:[#allocation11 + $0x18] sm:$0xff]
    %v1881 = vld [vmem:[#allocation11 + $0x20] sm:$0xff]
    %v1882 = vld [vmem:[#allocation11 + $0x28] sm:$0xff]
    %v1883 = vld [vmem:[#allocation11 + $0x30] sm:$0xff]
    %v1884 = vld [vmem:[#allocation11 + $0x38] sm:$0xff]
    %v1885 = vld [vmem:[#allocation11 + $0x40] sm:$0xff]
    %v1886 = vld [vmem:[#allocation11 + $0x48] sm:$0xff]
    %v1887 = vld [vmem:[#allocation11 + $0x50] sm:$0xff]
    %v1888 = vld [vmem:[#allocation11 + $0x58] sm:$0xff]
    %v1889 = vld [vmem:[#allocation11 + $0x60] sm:$0xff]
    %v1890 = vld [vmem:[#allocation11 + $0x68] sm:$0xff]
    %v1891 = vld [vmem:[#allocation11 + $0x70] sm:$0xff]
    %v1892 = vld [vmem:[#allocation11 + $0x78] sm:$0xff]
    %v1893 = vld [vmem:[#allocation11 + $0x80] sm:$0xff]
    %v1894 = vld [vmem:[#allocation11 + $0x88] sm:$0xff]
    %v1895 = vld [vmem:[#allocation11 + $0x90] sm:$0xff]
    %v1896 = vld [vmem:[#allocation11 + $0x98] sm:$0xff]
    %v1897 = vld [vmem:[#allocation11 + $0xa0] sm:$0xff]
    %v1898 = vld [vmem:[#allocation11 + $0xa8] sm:$0xff]
    %v1899 = vld [vmem:[#allocation11 + $0xb0] sm:$0xff]
    %v1900 = vld [vmem:[#allocation11 + $0xb8] sm:$0xff]
    %v1901 = vld [vmem:[#allocation11 + $0xc0] sm:$0xff]
    %v1902 = vld [vmem:[#allocation11 + $0xc8] sm:$0xff]
    %v1903 = vld [vmem:[#allocation11 + $0xd0] sm:$0xff]
    %v1904 = vld [vmem:[#allocation11 + $0xd8] sm:$0xff]
    %v1905 = vld [vmem:[#allocation11 + $0xe0] sm:$0xff]
    %v1906 = vld [vmem:[#allocation11 + $0xe8] sm:$0xff]
    %v1907 = vld [vmem:[#allocation11 + $0xf0] sm:$0xff]
    %v1908 = vld [vmem:[#allocation11 + $0xf8] sm:$0xff]
    %v1909 = vld [vmem:[%s6] sm:$0x3]
    %v1911 = vperm.slane %v1909, 0
    %v1912 = vperm.slane %v1909, 1
    %v1947 = vunpack.c.l.b16 %v1877
    %v1948 = vunpack.c.h.b16 %v1877
    %v1949 = vunpack.c.l.b16 %v1878
    %v1950 = vunpack.c.h.b16 %v1878
    %v1951 = vunpack.c.l.b16 %v1879
    %v1952 = vunpack.c.h.b16 %v1879
    %v1953 = vunpack.c.l.b16 %v1880
    %v1954 = vunpack.c.h.b16 %v1880
    %v1955 = vunpack.c.l.b16 %v1881
    %v1956 = vunpack.c.h.b16 %v1881
    %v1957 = vunpack.c.l.b16 %v1882
    %v1958 = vunpack.c.h.b16 %v1882
    %v1959 = vunpack.c.l.b16 %v1883
    %v1960 = vunpack.c.h.b16 %v1883
    %v1961 = vunpack.c.l.b16 %v1884
    %v1962 = vunpack.c.h.b16 %v1884
    %v1963 = vunpack.c.l.b16 %v1885
    %v1964 = vunpack.c.h.b16 %v1885
    %v1965 = vunpack.c.l.b16 %v1886
    %v1966 = vunpack.c.h.b16 %v1886
    %v1967 = vunpack.c.l.b16 %v1887
    %v1968 = vunpack.c.h.b16 %v1887
    %v1969 = vunpack.c.l.b16 %v1888
    %v1970 = vunpack.c.h.b16 %v1888
    %v1971 = vunpack.c.l.b16 %v1889
    %v1972 = vunpack.c.h.b16 %v1889
    %v1973 = vunpack.c.l.b16 %v1890
    %v1974 = vunpack.c.h.b16 %v1890
    %v1975 = vunpack.c.l.b16 %v1891
    %v1976 = vunpack.c.h.b16 %v1891
    %v1977 = vunpack.c.l.b16 %v1892
    %v1978 = vunpack.c.h.b16 %v1892
    %v1979 = vunpack.c.l.b16 %v1893
    %v1980 = vunpack.c.h.b16 %v1893
    %v1981 = vunpack.c.l.b16 %v1894
    %v1982 = vunpack.c.h.b16 %v1894
    %v1983 = vunpack.c.l.b16 %v1895
    %v1984 = vunpack.c.h.b16 %v1895
    %v1985 = vunpack.c.l.b16 %v1896
    %v1986 = vunpack.c.h.b16 %v1896
    %v1987 = vunpack.c.l.b16 %v1897
    %v1988 = vunpack.c.h.b16 %v1897
    %v1989 = vunpack.c.l.b16 %v1898
    %v1990 = vunpack.c.h.b16 %v1898
    %v1991 = vunpack.c.l.b16 %v1899
    %v1992 = vunpack.c.h.b16 %v1899
    %v1993 = vunpack.c.l.b16 %v1900
    %v1994 = vunpack.c.h.b16 %v1900
    %v1995 = vunpack.c.l.b16 %v1901
    %v1996 = vunpack.c.h.b16 %v1901
    %v1997 = vunpack.c.l.b16 %v1902
    %v1998 = vunpack.c.h.b16 %v1902
    %v1999 = vunpack.c.l.b16 %v1903
    %v2000 = vunpack.c.h.b16 %v1903
    %v2001 = vunpack.c.l.b16 %v1904
    %v2002 = vunpack.c.h.b16 %v1904
    %v2003 = vunpack.c.l.b16 %v1905
    %v2004 = vunpack.c.h.b16 %v1905
    %v2005 = vunpack.c.l.b16 %v1906
    %v2006 = vunpack.c.h.b16 %v1906
    %v2007 = vunpack.c.l.b16 %v1907
    %v2008 = vunpack.c.h.b16 %v1907
    %v2009 = vunpack.c.l.b16 %v1908
    %v2010 = vunpack.c.h.b16 %v1908
    %v2011 = vpack.c.b16 %v1949, %v1947
    %v2012 = vpack.c.b16 %v1950, %v1948
    %v2013 = vpack.c.b16 %v1953, %v1951
    %v2014 = vpack.c.b16 %v1954, %v1952
    %v2015 = vpack.c.b16 %v1957, %v1955
    %v2016 = vpack.c.b16 %v1958, %v1956
    %v2017 = vpack.c.b16 %v1961, %v1959
    %v2018 = vpack.c.b16 %v1962, %v1960
    %v2019 = vpack.c.b16 %v1965, %v1963
    %v2020 = vpack.c.b16 %v1966, %v1964
    %v2021 = vpack.c.b16 %v1969, %v1967
    %v2022 = vpack.c.b16 %v1970, %v1968
    %v2023 = vpack.c.b16 %v1973, %v1971
    %v2024 = vpack.c.b16 %v1974, %v1972
    %v2025 = vpack.c.b16 %v1977, %v1975
    %v2026 = vpack.c.b16 %v1978, %v1976
    %v2027 = vpack.c.b16 %v1981, %v1979
    %v2028 = vpack.c.b16 %v1982, %v1980
    %v2029 = vpack.c.b16 %v1985, %v1983
    %v2030 = vpack.c.b16 %v1986, %v1984
    %v2031 = vpack.c.b16 %v1989, %v1987
    %v2032 = vpack.c.b16 %v1990, %v1988
    %v2033 = vpack.c.b16 %v1993, %v1991
    %v2034 = vpack.c.b16 %v1994, %v1992
    %v2035 = vpack.c.b16 %v1997, %v1995
    %v2036 = vpack.c.b16 %v1998, %v1996
    %v2037 = vpack.c.b16 %v2001, %v1999
    %v2038 = vpack.c.b16 %v2002, %v2000
    %v2039 = vpack.c.b16 %v2005, %v2003
    %v2040 = vpack.c.b16 %v2006, %v2004
    %v2041 = vpack.c.b16 %v2009, %v2007
    %v2042 = vpack.c.b16 %v2010, %v2008
    %2075 = vmatpush.bf16.msra.mxu0 %v2025
    %2076 = vmatpush.bf16.msra.mxu0 %v2023
    %2077 = vmatpush.bf16.msra.mxu0 %v2021
    %2078 = vmatpush.bf16.msra.mxu0 %v2019
    %2079 = vmatpush.bf16.msra.mxu0 %v2017
    %2080 = vmatpush.bf16.msra.mxu0 %v2015
    %2081 = vmatpush.bf16.msra.mxu0 %v2013
    %2082 = vmatpush.bf16.msra.mxu0 %v2011
    %2083 = vmatmul.bf16.gmra.mxu0 %v1873
    %v2084 = vpop.f32.mrf.mxu0
    %v2085 = vadd.f32 %v1911, %v2084
    %v2086 = vpop.f32.mrf.mxu0
    %v2087 = vadd.f32 %v1911, %v2086
    %2088 = vmatmul.bf16.gmra.mxu0 %v1875
    %v2089 = vpop.f32.mrf.mxu0
    %v2090 = vadd.f32 %v1911, %v2089
    %v2091 = vpop.f32.mrf.mxu0
    %v2092 = vadd.f32 %v1911, %v2091
    %2093 = vdwg.mxu0
    %2094 = vmatpush.bf16.msra.mxu0 %v2041
    %2095 = vmatpush.bf16.msra.mxu0 %v2039
    %2096 = vmatpush.bf16.msra.mxu0 %v2037
    %2097 = vmatpush.bf16.msra.mxu0 %v2035
    %2098 = vmatpush.bf16.msra.mxu0 %v2033
    %2099 = vmatpush.bf16.msra.mxu0 %v2031
    %2100 = vmatpush.bf16.msra.mxu0 %v2029
    %2101 = vmatpush.bf16.msra.mxu0 %v2027
    %2102 = vmatmul.bf16.gmra.mxu0 %v1874
    %v2103 = vpop.f32.mrf.mxu0
    %v2104 = vadd.f32 %v2085, %v2103
    %v2105 = vpop.f32.mrf.mxu0
    %v2106 = vadd.f32 %v2087, %v2105
    %2107 = vmatmul.bf16.gmra.mxu0 %v1876
    %v2108 = vpop.f32.mrf.mxu0
    %v2109 = vadd.f32 %v2090, %v2108
    %v2110 = vpop.f32.mrf.mxu0
    %v2111 = vadd.f32 %v2092, %v2110
    %2112 = vdwg.mxu0
    %2113 = vmatpush.bf16.msra.mxu0 %v2026
    %2114 = vmatpush.bf16.msra.mxu0 %v2024
    %2115 = vmatpush.bf16.msra.mxu0 %v2022
    %2116 = vmatpush.bf16.msra.mxu0 %v2020
    %2117 = vmatpush.bf16.msra.mxu0 %v2018
    %2118 = vmatpush.bf16.msra.mxu0 %v2016
    %2119 = vmatpush.bf16.msra.mxu0 %v2014
    %2120 = vmatpush.bf16.msra.mxu0 %v2012
    %2121 = vmatmul.bf16.gmra.mxu0 %v1873
    %v2122 = vpop.f32.mrf.mxu0
    %v2123 = vadd.f32 %v1912, %v2122
    %v2124 = vpop.f32.mrf.mxu0
    %v2125 = vadd.f32 %v1912, %v2124
    %2126 = vmatmul.bf16.gmra.mxu0 %v1875
    %v2127 = vpop.f32.mrf.mxu0
    %v2128 = vadd.f32 %v1912, %v2127
    %v2129 = vpop.f32.mrf.mxu0
    %v2130 = vadd.f32 %v1912, %v2129
    %2131 = vdwg.mxu0
    %2132 = vmatpush.bf16.msra.mxu0 %v2042
    %2133 = vmatpush.bf16.msra.mxu0 %v2040
    %2134 = vmatpush.bf16.msra.mxu0 %v2038
    %2135 = vmatpush.bf16.msra.mxu0 %v2036
    %2136 = vmatpush.bf16.msra.mxu0 %v2034
    %2137 = vmatpush.bf16.msra.mxu0 %v2032
    %2138 = vmatpush.bf16.msra.mxu0 %v2030
    %2139 = vmatpush.bf16.msra.mxu0 %v2028
    %2140 = vmatmul.bf16.gmra.mxu0 %v1874
    %v2141 = vpop.f32.mrf.mxu0
    %v2142 = vadd.f32 %v2123, %v2141
    %v2143 = vpop.f32.mrf.mxu0
    %v2144 = vadd.f32 %v2125, %v2143
    %2145 = vmatmul.bf16.gmra.mxu0 %v1876
    %v2146 = vpop.f32.mrf.mxu0
    %v2147 = vadd.f32 %v2128, %v2146
    %v2148 = vpop.f32.mrf.mxu0
    %v2149 = vadd.f32 %v2130, %v2148
    %2150 = vdwg.mxu0
    %2151 = vst [vmem:[#allocation13] sm:$0xff] %v2104
    %2152 = vst [vmem:[#allocation13 + $0x8] sm:$0xff] %v2142
    %2153 = vst [vmem:[#allocation13 + $0x10] sm:$0xff] %v2106
    %2154 = vst [vmem:[#allocation13 + $0x18] sm:$0xff] %v2144
    %2155 = vst [vmem:[#allocation13 + $0x20] sm:$0xff] %v2109
    %2156 = vst [vmem:[#allocation13 + $0x28] sm:$0xff] %v2147
    %2157 = vst [vmem:[#allocation13 + $0x30] sm:$0xff] %v2111
    %2158 = vst [vmem:[#allocation13 + $0x38] sm:$0xff] %v2149
    // Predicated region
    $region54: #{tpu_custom_call.1} parent=1 // pred_check
      _
    $region55: #{tpu_custom_call.1} parent=1 // pred_check_branch
      %2160 = sbr.rel (0) target = $region57
    $region56: #{tpu_custom_call.1} parent=1 // pred_region
      %2162 = vsyncadd [#allocation4], 0
      %s2163 = sshll.u32 [#allocation13], 4
      %s2164 = int_to_ptr.vmem [resolvable:$true] %s2163
      %s2165 = sshll.u32 %s7, 4
      %s2166 = int_to_ptr.hbm [resolvable:$true] %s2165
      %2171 = dma.vmem_to_hbm [thread:$0]  %s2164, 1024, %s2166, [#allocation4], 256, 256, 16
    $region57: #{tpu_custom_call.1} parent=1 // pred_fallthru
      _
    // Predicated region
    $region58: #{tpu_custom_call.1} parent=1 // pred_check
      _
    $region59: #{tpu_custom_call.1} parent=1 // pred_check_branch
      %2173 = sbr.rel (0) target = $region61
    $region60: #{tpu_custom_call.1} parent=1 // pred_region
      %2175 = dma.done [#allocation4], 1024
    $region61: #{tpu_custom_call.1} parent=1 // pred_fallthru
      _
    %2176 = vsyncpa [#allocation3], 1
    %2177 = vsyncpa [#allocation6], 1
    %2178 = vsyncpa [#allocation9], 1
    %2179 = vsyncpa [#allocation12], 1
    %2180 = vsyncpa [#allocation4], 1

</llo_original>
